<compile_context>
chip_gen: v5e
topology: v5e:2x2
jax: 0.10.0
libtpu: 0.0.40
codegen_flags: <defaults>
</compile_context>

<pallas_src>
import jax
import jax.numpy as jnp
from jax.experimental import pallas as pl
from jax.experimental.pallas import tpu as pltpu


def activation_unit_kernel(item_ref, hist_ref,
                           w1i_ref, w1h_ref, w1x_ref, b1_ref,
                           wgt_ref, bg_ref, w2_ref, b2_ref,
                           ui_ref, aw_ref):
    # item_ref: (TB, D)        hist_ref: (TB, S, D)
    # w1*_ref:  (D, H)  pre-transposed slices of Linear(3D, H) weight
    # b1_ref:   (1, H)
    # wgt_ref:  (H, 2D) pre-transposed SwishGLU projection weight
    # bg_ref:   (1, 2D)
    # w2_ref:   (1, D)  final Linear(D, 1) weight row
    # b2_ref:   (1, 1)
    # ui_ref:   (TB, D) user_interest       aw_ref: (TB, S) attention_weight (lane-dense)
    TB, D = item_ref.shape
    S = hist_ref.shape[1]

    item = item_ref[...]                                   # (TB, D)
    hist = hist_ref[...]                                   # (TB, S, D)

    # DIN interaction features; the concat along the feature axis is folded
    # into three separate (pre-sliced) weight matmuls below.
    inter = hist * item[:, None, :]                        # (TB, S, D)

    hist_f = hist.reshape(TB * S, D)                       # (TB*S, D)
    inter_f = inter.reshape(TB * S, D)                     # (TB*S, D)

    # Linear(3D, H): attn_in @ W1.T + b1.  The item part is projected once per
    # batch row (M = TB), fused with the bias, and broadcast over S.
    row_bias = (jnp.dot(item, w1i_ref[...],
                        preferred_element_type=jnp.float32)
                + b1_ref[...])                             # (TB, H)
    h_flat = (jnp.dot(hist_f, w1h_ref[...],
                      preferred_element_type=jnp.float32)
              + jnp.dot(inter_f, w1x_ref[...],
                        preferred_element_type=jnp.float32))   # (TB*S, H)
    H = h_flat.shape[-1]
    h1 = h_flat.reshape(TB, S, H) + row_bias[:, None, :]   # (TB, S, H)

    # SwishGLU: one fused Linear(H, 2D), split into (proj, gate), proj * silu(gate).
    g = (jnp.dot(h1.reshape(TB * S, H), wgt_ref[...],
                 preferred_element_type=jnp.float32)
         + bg_ref[...])                                    # (TB*S, 2D)
    proj = g[:, :D]
    gate = g[:, D:]
    hidden = (proj * gate * jax.nn.sigmoid(gate)).reshape(TB, S, D)  # (TB, S, D)
    # Dropout: identity at inference time.

    # Final Linear(D, 1): a lane-reduce instead of an N=1 matmul; keep the
    # result 2-D (TB, S) so the output store is lane-dense.
    logits = jnp.sum(hidden * w2_ref[...], axis=-1) + b2_ref[...]    # (TB, S)
    aw_ref[...] = logits.astype(aw_ref.dtype)

    # Softmax over the history axis (last axis here), numerically stable.
    m = jnp.max(logits, axis=-1, keepdims=True)            # (TB, 1)
    p = jnp.exp(logits - m)                                # (TB, S)
    denom = jnp.sum(p, axis=-1, keepdims=True)             # (TB, 1)
    probs = p * pl.reciprocal(denom, approx=True)          # (TB, S)

    # user_interest = sum_s probs * hist
    ui_ref[...] = jnp.sum(probs[:, :, None] * hist, axis=1).astype(ui_ref.dtype)


def activation_unit(item_embd, hist_embd, w1, b1, wg, bg, w2, b2, *, block_b=128):
    B, D = item_embd.shape
    _, S, _ = hist_embd.shape
    H = w1.shape[0]
    assert w1.shape == (H, 3 * D) and wg.shape == (2 * D, H) and w2.shape == (1, D)

    # Hoist all static weight layout work out of the kernel (done once).
    w1t = w1.T                                   # (3D, H)
    w1i = w1t[:D]                                # item slab      (D, H)
    w1h = w1t[D:2 * D]                           # hist slab      (D, H)
    w1x = w1t[2 * D:]                            # interaction    (D, H)
    wgt = wg.T                                   # (H, 2D)
    b1r = b1.reshape(1, H)
    bgr = bg.reshape(1, 2 * D)
    w2r = w2.reshape(1, D)
    b2r = b2.reshape(1, 1)

    # Batch tiling: TB rows per grid step; TB must be a multiple of 8 sublanes
    # when the batch is actually tiled (otherwise TB == B is always legal).
    TB = min(block_b, B)
    if TB < B:
        TB = max(8, (TB // 8) * 8)
    Bp = ((B + TB - 1) // TB) * TB
    if Bp != B:
        pad = Bp - B
        item_embd = jnp.pad(item_embd, ((0, pad), (0, 0)))
        hist_embd = jnp.pad(hist_embd, ((0, pad), (0, 0), (0, 0)))

    const2 = lambda b: (0, 0)

    ui, aw = pl.pallas_call(
        activation_unit_kernel,
        out_shape=(jax.ShapeDtypeStruct((Bp, D), item_embd.dtype),
                   jax.ShapeDtypeStruct((Bp, S), item_embd.dtype)),
        grid_spec=pltpu.PrefetchScalarGridSpec(
            num_scalar_prefetch=0,
            grid=(Bp // TB,),
            in_specs=[
                pl.BlockSpec((TB, D), lambda b: (b, 0)),        # item_embd
                pl.BlockSpec((TB, S, D), lambda b: (b, 0, 0)),  # hist_embd
                pl.BlockSpec((D, H), const2),                   # W1.T item slab
                pl.BlockSpec((D, H), const2),                   # W1.T hist slab
                pl.BlockSpec((D, H), const2),                   # W1.T interaction slab
                pl.BlockSpec((1, H), const2),                   # b1
                pl.BlockSpec((H, 2 * D), const2),               # Wg.T
                pl.BlockSpec((1, 2 * D), const2),               # bg
                pl.BlockSpec((1, D), const2),                   # w2 row
                pl.BlockSpec((1, 1), const2),                   # b2
            ],
            out_specs=[
                pl.BlockSpec((TB, D), lambda b: (b, 0)),        # user_interest
                pl.BlockSpec((TB, S), lambda b: (b, 0)),        # attention_weight (B,S)
            ],
        ),
        compiler_params=pltpu.CompilerParams(
            dimension_semantics=("parallel",)),
    )(item_embd, hist_embd, w1i, w1h, w1x, b1r, wgt, bgr, w2r, b2r)

    # Restore the PyTorch output shapes: (B, D) and (B, S, 1).
    return ui[:B], aw[:B].reshape(B, S, 1)


def activation_unit_ref(item_embd, hist_embd, w1, b1, wg, bg, w2, b2):
    """Pure-JAX reference mirroring the PyTorch forward (eval mode)."""
    D = item_embd.shape[-1]
    exp_item = jnp.broadcast_to(item_embd[:, None, :], hist_embd.shape)
    inter = exp_item * hist_embd
    attn_in = jnp.concatenate([exp_item, hist_embd, inter], axis=-1)   # (B,S,3D)
    h1 = attn_in @ w1.T + b1                                           # (B,S,H)
    g = h1 @ wg.T + bg                                                 # (B,S,2D)
    proj, gate = g[..., :D], g[..., D:]
    hidden = proj * jax.nn.silu(gate)                                  # (B,S,D)
    aw = hidden @ w2.T + b2                                            # (B,S,1)
    prob = jax.nn.softmax(aw, axis=1)
    ui = jnp.sum(prob * hist_embd, axis=1)                             # (B,D)
    return ui, aw


if __name__ == "__main__":
    B, S, D, H = 16, 8, 32, 64   # batch, history length, embd_dim, attn_hidden_dim

    key = jax.random.PRNGKey(0)
    k_item, k_hist, k1, k2, k3 = jax.random.split(key, 5)

    item_embd = jax.random.normal(k_item, (B, D), dtype=jnp.float32)
    hist_embd = jax.random.normal(k_hist, (B, S, D), dtype=jnp.float32)

    def linear_init(k, out_dim, in_dim):
        kw, kb = jax.random.split(k)
        s = 1.0 / (in_dim ** 0.5)
        w = jax.random.uniform(kw, (out_dim, in_dim), jnp.float32, -s, s)
        b = jax.random.uniform(kb, (out_dim,), jnp.float32, -s, s)
        return w, b

    w1, b1 = linear_init(k1, H, 3 * D)        # nn.Linear(3D, H)
    wg, bg = linear_init(k2, 2 * D, H)        # SwishGLU projection: nn.Linear(H, 2D)
    w2, b2 = linear_init(k3, 1, D)            # nn.Linear(D, 1)

    ui, aw = activation_unit(item_embd, hist_embd, w1, b1, wg, bg, w2, b2,
                             block_b=8)       # 2 batch blocks -> multi-block parallel axis
    ui = jax.block_until_ready(ui)
    aw = jax.block_until_ready(aw)

    ui_ref, aw_ref = activation_unit_ref(item_embd, hist_embd, w1, b1, wg, bg, w2, b2)
    assert ui.shape == (B, D) and aw.shape == (B, S, 1)
    err_aw = float(jnp.max(jnp.abs(aw - aw_ref)))
    err_ui = float(jnp.max(jnp.abs(ui - ui_ref)))
    # attention_weight does not go through the approximate reciprocal -> tight tol;
    # user_interest includes pl.reciprocal(approx=True) -> slightly looser tol.
    assert jnp.allclose(aw, aw_ref, atol=1e-3, rtol=1e-3), f"aw max abs err = {err_aw}"
    assert jnp.allclose(ui, ui_ref, atol=5e-3, rtol=5e-3), f"ui max abs err = {err_ui}"

    print("KERNEL_OK")
</pallas_src>

<mosaic_0001>
module attributes {stable_mosaic.version = 11 : i64} {
  func.func @activation_unit_kernel(%arg0: i32, %arg1: memref<8x32xf32, #tpu.memory_space<vmem>>, %arg2: memref<8x8x32xf32, #tpu.memory_space<vmem>>, %arg3: memref<32x64xf32, #tpu.memory_space<vmem>>, %arg4: memref<32x64xf32, #tpu.memory_space<vmem>>, %arg5: memref<32x64xf32, #tpu.memory_space<vmem>>, %arg6: memref<1x64xf32, #tpu.memory_space<vmem>>, %arg7: memref<64x64xf32, #tpu.memory_space<vmem>>, %arg8: memref<1x64xf32, #tpu.memory_space<vmem>>, %arg9: memref<1x32xf32, #tpu.memory_space<vmem>>, %arg10: memref<1x1xf32, #tpu.memory_space<vmem>>, %arg11: memref<8x32xf32, #tpu.memory_space<vmem>>, %arg12: memref<8x8xf32, #tpu.memory_space<vmem>>) attributes {dimension_semantics = [#tpu.dimension_semantics<parallel>], iteration_bounds = array<i64: 2>, scalar_prefetch = 0 : i64, scratch_operands = 0 : i64, tpu.core_type = #tpu.core_type<tc>, window_params = [{transform_indices = @transform_0, window_bounds = array<i64: 8, 32>}, {transform_indices = @transform_1, window_bounds = array<i64: 8, 8, 32>}, {pipeline_mode = #tpu.pipeline_mode<synchronous>, transform_indices = @transform_2, window_bounds = array<i64: 32, 64>}, {pipeline_mode = #tpu.pipeline_mode<synchronous>, transform_indices = @transform_3, window_bounds = array<i64: 32, 64>}, {pipeline_mode = #tpu.pipeline_mode<synchronous>, transform_indices = @transform_4, window_bounds = array<i64: 32, 64>}, {pipeline_mode = #tpu.pipeline_mode<synchronous>, transform_indices = @transform_5, window_bounds = array<i64: 1, 64>}, {pipeline_mode = #tpu.pipeline_mode<synchronous>, transform_indices = @transform_6, window_bounds = array<i64: 64, 64>}, {pipeline_mode = #tpu.pipeline_mode<synchronous>, transform_indices = @transform_7, window_bounds = array<i64: 1, 64>}, {pipeline_mode = #tpu.pipeline_mode<synchronous>, transform_indices = @transform_8, window_bounds = array<i64: 1, 32>}, {pipeline_mode = #tpu.pipeline_mode<synchronous>, transform_indices = @transform_9, window_bounds = array<i64: 1, 1>}, {transform_indices = @transform_10, window_bounds = array<i64: 8, 32>}, {transform_indices = @transform_11, window_bounds = array<i64: 8, 8>}]} {
    %c0 = arith.constant 0 : index
    %c0_0 = arith.constant 0 : index
    %0 = vector.load %arg1[%c0, %c0_0] : memref<8x32xf32, #tpu.memory_space<vmem>>, vector<8x32xf32>
    %c0_1 = arith.constant 0 : index
    %c0_2 = arith.constant 0 : index
    %c0_3 = arith.constant 0 : index
    %1 = vector.load %arg2[%c0_1, %c0_2, %c0_3] : memref<8x8x32xf32, #tpu.memory_space<vmem>>, vector<8x8x32xf32>
    %2 = vector.shape_cast %0 : vector<8x32xf32> to vector<8x1x32xf32>
    %3 = vector.broadcast %2 : vector<8x1x32xf32> to vector<8x8x32xf32>
    %4 = arith.mulf %1, %3 : vector<8x8x32xf32>
    %5 = vector.shape_cast %1 : vector<8x8x32xf32> to vector<64x32xf32>
    %6 = vector.shape_cast %4 : vector<8x8x32xf32> to vector<64x32xf32>
    %c0_4 = arith.constant 0 : index
    %c0_5 = arith.constant 0 : index
    %7 = vector.load %arg3[%c0_4, %c0_5] : memref<32x64xf32, #tpu.memory_space<vmem>>, vector<32x64xf32>
    %cst = arith.constant dense<0.000000e+00> : vector<8x64xf32>
    %8 = tpu.matmul %0, %7, %cst {dimension_numbers = #tpu.dot_dimension_numbers<[1], [0], [0], [1], [0, 0, 1, 1], [], []>} : vector<8x32xf32>, vector<32x64xf32>, vector<8x64xf32> -> vector<8x64xf32>
    %c0_6 = arith.constant 0 : index
    %c0_7 = arith.constant 0 : index
    %9 = vector.load %arg6[%c0_6, %c0_7] : memref<1x64xf32, #tpu.memory_space<vmem>>, vector<1x64xf32>
    %10 = vector.broadcast %9 : vector<1x64xf32> to vector<8x64xf32>
    %11 = arith.addf %8, %10 : vector<8x64xf32>
    %c0_8 = arith.constant 0 : index
    %c0_9 = arith.constant 0 : index
    %12 = vector.load %arg4[%c0_8, %c0_9] : memref<32x64xf32, #tpu.memory_space<vmem>>, vector<32x64xf32>
    %cst_10 = arith.constant dense<0.000000e+00> : vector<64x64xf32>
    %13 = tpu.matmul %5, %12, %cst_10 {dimension_numbers = #tpu.dot_dimension_numbers<[1], [0], [0], [1], [0, 0, 1, 1], [], []>} : vector<64x32xf32>, vector<32x64xf32>, vector<64x64xf32> -> vector<64x64xf32>
    %c0_11 = arith.constant 0 : index
    %c0_12 = arith.constant 0 : index
    %14 = vector.load %arg5[%c0_11, %c0_12] : memref<32x64xf32, #tpu.memory_space<vmem>>, vector<32x64xf32>
    %cst_13 = arith.constant dense<0.000000e+00> : vector<64x64xf32>
    %15 = tpu.matmul %6, %14, %cst_13 {dimension_numbers = #tpu.dot_dimension_numbers<[1], [0], [0], [1], [0, 0, 1, 1], [], []>} : vector<64x32xf32>, vector<32x64xf32>, vector<64x64xf32> -> vector<64x64xf32>
    %16 = arith.addf %13, %15 : vector<64x64xf32>
    %17 = vector.shape_cast %16 : vector<64x64xf32> to vector<8x8x64xf32>
    %18 = vector.shape_cast %11 : vector<8x64xf32> to vector<8x1x64xf32>
    %19 = vector.broadcast %18 : vector<8x1x64xf32> to vector<8x8x64xf32>
    %20 = arith.addf %17, %19 : vector<8x8x64xf32>
    %21 = vector.shape_cast %20 : vector<8x8x64xf32> to vector<64x64xf32>
    %c0_14 = arith.constant 0 : index
    %c0_15 = arith.constant 0 : index
    %22 = vector.load %arg7[%c0_14, %c0_15] : memref<64x64xf32, #tpu.memory_space<vmem>>, vector<64x64xf32>
    %cst_16 = arith.constant dense<0.000000e+00> : vector<64x64xf32>
    %23 = tpu.matmul %21, %22, %cst_16 {dimension_numbers = #tpu.dot_dimension_numbers<[1], [0], [0], [1], [0, 0, 1, 1], [], []>} : vector<64x64xf32>, vector<64x64xf32>, vector<64x64xf32> -> vector<64x64xf32>
    %c0_17 = arith.constant 0 : index
    %c0_18 = arith.constant 0 : index
    %24 = vector.load %arg8[%c0_17, %c0_18] : memref<1x64xf32, #tpu.memory_space<vmem>>, vector<1x64xf32>
    %25 = vector.broadcast %24 : vector<1x64xf32> to vector<64x64xf32>
    %26 = arith.addf %23, %25 : vector<64x64xf32>
    %27 = vector.extract_strided_slice %26 {offsets = [0, 0], sizes = [64, 32], strides = [1, 1]} : vector<64x64xf32> to vector<64x32xf32>
    %28 = vector.extract_strided_slice %26 {offsets = [0, 32], sizes = [64, 32], strides = [1, 1]} : vector<64x64xf32> to vector<64x32xf32>
    %29 = arith.mulf %27, %28 : vector<64x32xf32>
    %30 = arith.negf %28 : vector<64x32xf32>
    %31 = math.exp %30 : vector<64x32xf32>
    %cst_19 = arith.constant 1.000000e+00 : f32
    %32 = vector.broadcast %cst_19 : f32 to vector<64x32xf32>
    %33 = arith.addf %32, %31 : vector<64x32xf32>
    %34 = arith.divf %32, %33 : vector<64x32xf32>
    %35 = arith.mulf %29, %34 : vector<64x32xf32>
    %36 = vector.shape_cast %35 : vector<64x32xf32> to vector<8x8x32xf32>
    %c0_20 = arith.constant 0 : index
    %c0_21 = arith.constant 0 : index
    %37 = vector.load %arg9[%c0_20, %c0_21] : memref<1x32xf32, #tpu.memory_space<vmem>>, vector<1x32xf32>
    %38 = vector.shape_cast %37 : vector<1x32xf32> to vector<1x1x32xf32>
    %39 = vector.broadcast %38 : vector<1x1x32xf32> to vector<8x8x32xf32>
    %40 = arith.mulf %36, %39 : vector<8x8x32xf32>
    %cst_22 = arith.constant dense<0.000000e+00> : vector<8x8xf32>
    %41 = vector.multi_reduction <add>, %40, %cst_22 [2] : vector<8x8x32xf32> to vector<8x8xf32>
    %c0_23 = arith.constant 0 : index
    %c0_24 = arith.constant 0 : index
    %42 = vector.load %arg10[%c0_23, %c0_24] : memref<1x1xf32, #tpu.memory_space<vmem>>, vector<1x1xf32>
    %43 = vector.broadcast %42 : vector<1x1xf32> to vector<8x8xf32>
    %44 = arith.addf %41, %43 : vector<8x8xf32>
    %c0_25 = arith.constant 0 : index
    %c0_26 = arith.constant 0 : index
    %45 = vector.load %arg12[%c0_25, %c0_26] : memref<8x8xf32, #tpu.memory_space<vmem>>, vector<8x8xf32>
    tpu.vector_store %arg12[%c0_25, %c0_26], %44 {strides = array<i32>} : memref<8x8xf32, #tpu.memory_space<vmem>>, vector<8x8xf32>,
    %cst_27 = arith.constant dense<0xFF800000> : vector<8xf32>
    %46 = vector.multi_reduction <maximumf>, %44, %cst_27 [1] : vector<8x8xf32> to vector<8xf32>
    %47 = vector.shape_cast %46 : vector<8xf32> to vector<8x1xf32>
    %48 = vector.broadcast %47 : vector<8x1xf32> to vector<8x8xf32>
    %49 = arith.subf %44, %48 : vector<8x8xf32>
    %50 = math.exp %49 : vector<8x8xf32>
    %cst_28 = arith.constant dense<0.000000e+00> : vector<8xf32>
    %51 = vector.multi_reduction <add>, %50, %cst_28 [1] : vector<8x8xf32> to vector<8xf32>
    %52 = vector.shape_cast %51 : vector<8xf32> to vector<8x1xf32>
    %53 = tpu.reciprocal %52 {approx = true} : vector<8x1xf32> -> vector<8x1xf32>
    %54 = vector.broadcast %53 : vector<8x1xf32> to vector<8x8xf32>
    %55 = arith.mulf %50, %54 : vector<8x8xf32>
    %56 = vector.shape_cast %55 : vector<8x8xf32> to vector<8x8x1xf32>
    %57 = vector.broadcast %56 : vector<8x8x1xf32> to vector<8x8x32xf32>
    %58 = arith.mulf %57, %1 : vector<8x8x32xf32>
    %cst_29 = arith.constant dense<0.000000e+00> : vector<8x32xf32>
    %59 = vector.multi_reduction <add>, %58, %cst_29 [1] : vector<8x8x32xf32> to vector<8x32xf32>
    %c0_30 = arith.constant 0 : index
    %c0_31 = arith.constant 0 : index
    %60 = vector.load %arg11[%c0_30, %c0_31] : memref<8x32xf32, #tpu.memory_space<vmem>>, vector<8x32xf32>
    tpu.vector_store %arg11[%c0_30, %c0_31], %59 {strides = array<i32>} : memref<8x32xf32, #tpu.memory_space<vmem>>, vector<8x32xf32>,
    return
  }
  func.func @transform_0(%arg0: i32) -> (i32, i32) {
    %c0_i32 = arith.constant 0 : i32
    %c0_i32_0 = arith.constant 0 : i32
    return %arg0, %c0_i32 : i32, i32
  }
  func.func @transform_1(%arg0: i32) -> (i32, i32, i32) {
    %c0_i32 = arith.constant 0 : i32
    %c0_i32_0 = arith.constant 0 : i32
    %c0_i32_1 = arith.constant 0 : i32
    return %arg0, %c0_i32, %c0_i32_0 : i32, i32, i32
  }
  func.func @transform_2(%arg0: i32) -> (i32, i32) {
    %c0_i32 = arith.constant 0 : i32
    %c0_i32_0 = arith.constant 0 : i32
    %c0_i32_1 = arith.constant 0 : i32
    return %c0_i32, %c0_i32_0 : i32, i32
  }
  func.func @transform_3(%arg0: i32) -> (i32, i32) {
    %c0_i32 = arith.constant 0 : i32
    %c0_i32_0 = arith.constant 0 : i32
    %c0_i32_1 = arith.constant 0 : i32
    return %c0_i32, %c0_i32_0 : i32, i32
  }
  func.func @transform_4(%arg0: i32) -> (i32, i32) {
    %c0_i32 = arith.constant 0 : i32
    %c0_i32_0 = arith.constant 0 : i32
    %c0_i32_1 = arith.constant 0 : i32
    return %c0_i32, %c0_i32_0 : i32, i32
  }
  func.func @transform_5(%arg0: i32) -> (i32, i32) {
    %c0_i32 = arith.constant 0 : i32
    %c0_i32_0 = arith.constant 0 : i32
    %c0_i32_1 = arith.constant 0 : i32
    return %c0_i32, %c0_i32_0 : i32, i32
  }
  func.func @transform_6(%arg0: i32) -> (i32, i32) {
    %c0_i32 = arith.constant 0 : i32
    %c0_i32_0 = arith.constant 0 : i32
    %c0_i32_1 = arith.constant 0 : i32
    return %c0_i32, %c0_i32_0 : i32, i32
  }
  func.func @transform_7(%arg0: i32) -> (i32, i32) {
    %c0_i32 = arith.constant 0 : i32
    %c0_i32_0 = arith.constant 0 : i32
    %c0_i32_1 = arith.constant 0 : i32
    return %c0_i32, %c0_i32_0 : i32, i32
  }
  func.func @transform_8(%arg0: i32) -> (i32, i32) {
    %c0_i32 = arith.constant 0 : i32
    %c0_i32_0 = arith.constant 0 : i32
    %c0_i32_1 = arith.constant 0 : i32
    return %c0_i32, %c0_i32_0 : i32, i32
  }
  func.func @transform_9(%arg0: i32) -> (i32, i32) {
    %c0_i32 = arith.constant 0 : i32
    %c0_i32_0 = arith.constant 0 : i32
    %c0_i32_1 = arith.constant 0 : i32
    return %c0_i32, %c0_i32_0 : i32, i32
  }
  func.func @transform_10(%arg0: i32) -> (i32, i32) {
    %c0_i32 = arith.constant 0 : i32
    %c0_i32_0 = arith.constant 0 : i32
    return %arg0, %c0_i32 : i32, i32
  }
  func.func @transform_11(%arg0: i32) -> (i32, i32) {
    %c0_i32 = arith.constant 0 : i32
    %c0_i32_0 = arith.constant 0 : i32
    return %arg0, %c0_i32 : i32, i32
  }
}

</mosaic_0001>

<llo_original>
// kernel: tpu_custom_call.1
$region0: #{tpu_custom_call.1}
  #allocation0 [shape = 'u32[]', space=smem, size = 0x4, offset = 0x4, fixed_abs, tag = 'smem constant byte address 0x4 - core index']
  #allocation1 [shape = 'u32[72,128]{1,0:T(1,128)}', space=vmem, size = 0x9000, scoped, tag = 'internal scratch']
  #allocation2 [shape = 'f32[1,1]{1,0:T(1,128)S(1)}', space=vmem, size = 0x200, scoped, tag = 'scoped memory for tpu_custom_call.1']
  %s0 = inlined_call_operand.hbm [shape: f32[16,32], index: 0, kind: input, shape index: {}]
  %s1 = inlined_call_operand.hbm [shape: f32[16,8,32], index: 1, kind: input, shape index: {}]
  %s2 = inlined_call_operand.hbm [shape: f32[32,64], index: 2, kind: input, shape index: {}]
  %s3 = inlined_call_operand.hbm [shape: f32[32,64], index: 3, kind: input, shape index: {}]
  %s4 = inlined_call_operand.hbm [shape: f32[32,64], index: 4, kind: input, shape index: {}]
  %s5 = inlined_call_operand.vmem [shape: f32[1,64], index: 5, kind: input, shape index: {}]
  %s6 = inlined_call_operand.hbm [shape: f32[64,64], index: 6, kind: input, shape index: {}]
  %s7 = inlined_call_operand.vmem [shape: f32[1,64], index: 7, kind: input, shape index: {}]
  %s8 = inlined_call_operand.vmem [shape: f32[1,32], index: 8, kind: input, shape index: {}]
  %s9 = inlined_call_operand.<no memory space> [shape: f32[1,1], index: 9, kind: input, shape index: {}]
  %s10 = inlined_call_operand.hbm [shape: f32[16,32], index: 10, kind: output, shape index: {0}]
  %s11 = inlined_call_operand.vmem [shape: f32[16,8], index: 11, kind: output, shape index: {1}]
  %12 = xla_tuple %s10, %s11
  %s13 = sld [smem:[#allocation0]]
  $region105: #{tpu_custom_call.1} parent=0
    _
  %s15 = ssub.s32 1, %s13
  %s16 = scalar_select 0, %s15, %s13
  %v17 = vstv %s9
  %18 = vst [vmem:[#allocation2] sm:$0x1] %v17
  $region1: #{tpu_custom_call.1} parent=0
    #allocation3 [shape = 'u8[8192]{0}', space=vmem, size = 0x2000, scoped, tag = 'input window, operand 0']
    #allocation4 [shape = 's32[2]{0}', space=sflag, size = 0x8, scoped, tag = 'scoped memory for tpu_custom_call.1']
    #allocation5 [shape = 's32[2]{0}', space=sflag, size = 0x8, scoped, tag = 'scoped memory for tpu_custom_call.1']
    #allocation6 [shape = 'u8[65536]{0}', space=vmem, size = 0x10000, scoped, tag = 'input window, operand 1']
    #allocation7 [shape = 's32[2]{0}', space=sflag, size = 0x8, scoped, tag = 'scoped memory for tpu_custom_call.1']
    #allocation8 [shape = 'u8[16384]{0}', space=vmem, size = 0x4000, scoped, tag = 'input window, operand 2, single buffered']
    #allocation9 [shape = 'u8[16384]{0}', space=vmem, size = 0x4000, scoped, tag = 'input window, operand 3, single buffered']
    #allocation10 [shape = 's32[1]{0}', space=sflag, size = 0x4, scoped, tag = 'scoped memory for tpu_custom_call.1']
    #allocation11 [shape = 'u8[16384]{0}', space=vmem, size = 0x4000, scoped, tag = 'input window, operand 4, single buffered']
    #allocation12 [shape = 'u8[32768]{0}', space=vmem, size = 0x8000, scoped, tag = 'input window, operand 6, single buffered']
    #allocation13 [shape = 's32[1]{0}', space=sflag, size = 0x4, scoped, tag = 'scoped memory for tpu_custom_call.1']
    #allocation14 [shape = 'u8[8192]{0}', space=vmem, size = 0x2000, scoped, tag = 'output window, operand 0']
    %19 = vsyncpa [#allocation4], 0
    %s20 = scalar_lea.sflag [#allocation4], 1
    %21 = vsyncpa %s20, 0
    %22 = vsyncpa [#allocation7], 0
    %s23 = scalar_lea.sflag [#allocation7], 1
    %24 = vsyncpa %s23, 0
    %25 = vsyncpa [#allocation10], 0
    %26 = vsyncpa [#allocation13], 0
    %27 = vsyncpa [#allocation5], 0
    %s28 = scalar_lea.sflag [#allocation5], 1
    %29 = vsyncpa %s28, 0
    loop: start=0, step=1, limit=4
    $region2: #{tpu_custom_call.1} parent=1 // loop_pre_header
      _
    $region3: #{tpu_custom_call.1} parent=1 // loop_header
      %s31 = sphi 0, %s35
      %p32 = scmp.ge.s32.totalorder %s31, 4
      %s41 = sphi 0, %s43
      %s44 = sphi 0, %s41
      %s45 = sphi 0, %s44
      %s61 = sphi 0, %s45
      %s67 = sphi 0, %s69
      %s70 = sphi 0, %s67
      %s71 = sphi 0, %s70
      %s87 = sphi 0, %s71
      %s91 = sphi 0, %s91
      %s93 = sphi 0, %s91
      %s94 = sphi 0, %s93
      %s108 = sphi 0, %s94
      %s112 = sphi 0, %s112
      %s114 = sphi 0, %s112
      %s115 = sphi 0, %s114
      %s129 = sphi 0, %s115
      %s133 = sphi 0, %s133
      %s135 = sphi 0, %s133
      %s136 = sphi 0, %s135
      %s150 = sphi 0, %s136
      %s154 = sphi 0, %s154
      %s156 = sphi 0, %s154
      %s157 = sphi 0, %s156
      %s171 = sphi 0, %s157
      %s175 = sphi 0, %s175
      %s177 = sphi 0, %s175
      %s178 = sphi 0, %s177
      %s192 = sphi 0, %s178
      %s196 = sphi 0, %s196
      %s198 = sphi 0, %s196
      %s199 = sphi 0, %s198
      %s213 = sphi 0, %s199
      %s217 = sphi 0, %s217
      %s219 = sphi 0, %s217
      %s220 = sphi 0, %s219
      %s234 = sphi 0, %s220
      %s238 = sphi 0, %s238
      %s240 = sphi 0, %s238
      %s241 = sphi 0, %s240
      %s255 = sphi 0, %s241
      %s261 = sphi 0, %s263
      %s264 = sphi 0, %s261
      %s265 = sphi 0, %s264
      %s281 = sphi 0, %s265
      %s287 = sphi 0, %s289
      %s290 = sphi 0, %s287
      %s291 = sphi 0, %s290
      %s307 = sphi 0, %s291
    $region4: #{tpu_custom_call.1} parent=1 // loop_header_branch
      %34 = sbr.rel (%p32) target = $region8
    $region5: #{tpu_custom_call.1} parent=1 // loop_body
      %s36 = ssub.s32 %s31, 1
      %s37 = ssub.s32 %s31, 2
      %s38 = sadd.s32 %s31, 1
      %s39 = ssub.s32 %s31, %s38
      %p40 = scmp.eq.s32.totalorder %s39, 0
      %s42 = sadd.s32 %s41, 1
      %s43 = scalar_select %p40, %s41, %s42
      %p46 = pneg %p40
      %p47 = scmp.eq.s32.totalorder %s31, 1
      %p48 = por %p46, %p47
      %p49 = scmp.ne.s32.totalorder %s41, %s44
      %p50 = scmp.eq.s32.totalorder %s31, 0
      %p51 = por %p49, %p50
      %p52 = scmp.ne.s32.totalorder %s41, %s44
      %p53 = scmp.eq.s32.totalorder %s36, 1
      %p54 = por %p52, %p53
      %p55 = scmp.ne.s32.totalorder %s44, %s45
      %p56 = scmp.eq.s32.totalorder %s36, 0
      %p57 = por %p55, %p56
      %p58 = scmp.ne.s32.totalorder %s44, %s45
      %p59 = scmp.eq.s32.totalorder %s37, 1
      %p60 = por %p58, %p59
      %p62 = scmp.ne.s32.totalorder %s45, %s61
      %p63 = scmp.eq.s32.totalorder %s37, 0
      %p64 = por %p62, %p63
      %s65 = ssub.s32 %s31, %s38
      %p66 = scmp.eq.s32.totalorder %s65, 0
      %s68 = sadd.s32 %s67, 1
      %s69 = scalar_select %p66, %s67, %s68
      %p72 = pneg %p66
      %p73 = scmp.eq.s32.totalorder %s31, 1
      %p74 = por %p72, %p73
      %p75 = scmp.ne.s32.totalorder %s67, %s70
      %p76 = scmp.eq.s32.totalorder %s31, 0
      %p77 = por %p75, %p76
      %p78 = scmp.ne.s32.totalorder %s67, %s70
      %p79 = scmp.eq.s32.totalorder %s36, 1
      %p80 = por %p78, %p79
      %p81 = scmp.ne.s32.totalorder %s70, %s71
      %p82 = scmp.eq.s32.totalorder %s36, 0
      %p83 = por %p81, %p82
      %p84 = scmp.ne.s32.totalorder %s70, %s71
      %p85 = scmp.eq.s32.totalorder %s37, 1
      %p86 = por %p84, %p85
      %p88 = scmp.ne.s32.totalorder %s71, %s87
      %p89 = scmp.eq.s32.totalorder %s37, 0
      %p90 = por %p88, %p89
      %s92 = sadd.s32 %s91, 1
      %p95 = scmp.eq.s32.totalorder %s31, 1
      %p96 = scmp.ne.s32.totalorder %s91, %s93
      %p97 = scmp.eq.s32.totalorder %s31, 0
      %p98 = por %p96, %p97
      %p99 = scmp.ne.s32.totalorder %s91, %s93
      %p100 = scmp.eq.s32.totalorder %s36, 1
      %p101 = por %p99, %p100
      %p102 = scmp.ne.s32.totalorder %s93, %s94
      %p103 = scmp.eq.s32.totalorder %s36, 0
      %p104 = por %p102, %p103
      %p105 = scmp.ne.s32.totalorder %s93, %s94
      %p106 = scmp.eq.s32.totalorder %s37, 1
      %p107 = por %p105, %p106
      %p109 = scmp.ne.s32.totalorder %s94, %s108
      %p110 = scmp.eq.s32.totalorder %s37, 0
      %p111 = por %p109, %p110
      %s113 = sadd.s32 %s112, 1
      %p116 = scmp.eq.s32.totalorder %s31, 1
      %p117 = scmp.ne.s32.totalorder %s112, %s114
      %p118 = scmp.eq.s32.totalorder %s31, 0
      %p119 = por %p117, %p118
      %p120 = scmp.ne.s32.totalorder %s112, %s114
      %p121 = scmp.eq.s32.totalorder %s36, 1
      %p122 = por %p120, %p121
      %p123 = scmp.ne.s32.totalorder %s114, %s115
      %p124 = scmp.eq.s32.totalorder %s36, 0
      %p125 = por %p123, %p124
      %p126 = scmp.ne.s32.totalorder %s114, %s115
      %p127 = scmp.eq.s32.totalorder %s37, 1
      %p128 = por %p126, %p127
      %p130 = scmp.ne.s32.totalorder %s115, %s129
      %p131 = scmp.eq.s32.totalorder %s37, 0
      %p132 = por %p130, %p131
      %s134 = sadd.s32 %s133, 1
      %p137 = scmp.eq.s32.totalorder %s31, 1
      %p138 = scmp.ne.s32.totalorder %s133, %s135
      %p139 = scmp.eq.s32.totalorder %s31, 0
      %p140 = por %p138, %p139
      %p141 = scmp.ne.s32.totalorder %s133, %s135
      %p142 = scmp.eq.s32.totalorder %s36, 1
      %p143 = por %p141, %p142
      %p144 = scmp.ne.s32.totalorder %s135, %s136
      %p145 = scmp.eq.s32.totalorder %s36, 0
      %p146 = por %p144, %p145
      %p147 = scmp.ne.s32.totalorder %s135, %s136
      %p148 = scmp.eq.s32.totalorder %s37, 1
      %p149 = por %p147, %p148
      %p151 = scmp.ne.s32.totalorder %s136, %s150
      %p152 = scmp.eq.s32.totalorder %s37, 0
      %p153 = por %p151, %p152
      %s155 = sadd.s32 %s154, 1
      %p158 = scmp.eq.s32.totalorder %s31, 1
      %p159 = scmp.ne.s32.totalorder %s154, %s156
      %p160 = scmp.eq.s32.totalorder %s31, 0
      %p161 = por %p159, %p160
      %p162 = scmp.ne.s32.totalorder %s154, %s156
      %p163 = scmp.eq.s32.totalorder %s36, 1
      %p164 = por %p162, %p163
      %p165 = scmp.ne.s32.totalorder %s156, %s157
      %p166 = scmp.eq.s32.totalorder %s36, 0
      %p167 = por %p165, %p166
      %p168 = scmp.ne.s32.totalorder %s156, %s157
      %p169 = scmp.eq.s32.totalorder %s37, 1
      %p170 = por %p168, %p169
      %p172 = scmp.ne.s32.totalorder %s157, %s171
      %p173 = scmp.eq.s32.totalorder %s37, 0
      %p174 = por %p172, %p173
      %s176 = sadd.s32 %s175, 1
      %p179 = scmp.eq.s32.totalorder %s31, 1
      %p180 = scmp.ne.s32.totalorder %s175, %s177
      %p181 = scmp.eq.s32.totalorder %s31, 0
      %p182 = por %p180, %p181
      %p183 = scmp.ne.s32.totalorder %s175, %s177
      %p184 = scmp.eq.s32.totalorder %s36, 1
      %p185 = por %p183, %p184
      %p186 = scmp.ne.s32.totalorder %s177, %s178
      %p187 = scmp.eq.s32.totalorder %s36, 0
      %p188 = por %p186, %p187
      %p189 = scmp.ne.s32.totalorder %s177, %s178
      %p190 = scmp.eq.s32.totalorder %s37, 1
      %p191 = por %p189, %p190
      %p193 = scmp.ne.s32.totalorder %s178, %s192
      %p194 = scmp.eq.s32.totalorder %s37, 0
      %p195 = por %p193, %p194
      %s197 = sadd.s32 %s196, 1
      %p200 = scmp.eq.s32.totalorder %s31, 1
      %p201 = scmp.ne.s32.totalorder %s196, %s198
      %p202 = scmp.eq.s32.totalorder %s31, 0
      %p203 = por %p201, %p202
      %p204 = scmp.ne.s32.totalorder %s196, %s198
      %p205 = scmp.eq.s32.totalorder %s36, 1
      %p206 = por %p204, %p205
      %p207 = scmp.ne.s32.totalorder %s198, %s199
      %p208 = scmp.eq.s32.totalorder %s36, 0
      %p209 = por %p207, %p208
      %p210 = scmp.ne.s32.totalorder %s198, %s199
      %p211 = scmp.eq.s32.totalorder %s37, 1
      %p212 = por %p210, %p211
      %p214 = scmp.ne.s32.totalorder %s199, %s213
      %p215 = scmp.eq.s32.totalorder %s37, 0
      %p216 = por %p214, %p215
      %s218 = sadd.s32 %s217, 1
      %p221 = scmp.eq.s32.totalorder %s31, 1
      %p222 = scmp.ne.s32.totalorder %s217, %s219
      %p223 = scmp.eq.s32.totalorder %s31, 0
      %p224 = por %p222, %p223
      %p225 = scmp.ne.s32.totalorder %s217, %s219
      %p226 = scmp.eq.s32.totalorder %s36, 1
      %p227 = por %p225, %p226
      %p228 = scmp.ne.s32.totalorder %s219, %s220
      %p229 = scmp.eq.s32.totalorder %s36, 0
      %p230 = por %p228, %p229
      %p231 = scmp.ne.s32.totalorder %s219, %s220
      %p232 = scmp.eq.s32.totalorder %s37, 1
      %p233 = por %p231, %p232
      %p235 = scmp.ne.s32.totalorder %s220, %s234
      %p236 = scmp.eq.s32.totalorder %s37, 0
      %p237 = por %p235, %p236
      %s239 = sadd.s32 %s238, 1
      %p242 = scmp.eq.s32.totalorder %s31, 1
      %p243 = scmp.ne.s32.totalorder %s238, %s240
      %p244 = scmp.eq.s32.totalorder %s31, 0
      %p245 = por %p243, %p244
      %p246 = scmp.ne.s32.totalorder %s238, %s240
      %p247 = scmp.eq.s32.totalorder %s36, 1
      %p248 = por %p246, %p247
      %p249 = scmp.ne.s32.totalorder %s240, %s241
      %p250 = scmp.eq.s32.totalorder %s36, 0
      %p251 = por %p249, %p250
      %p252 = scmp.ne.s32.totalorder %s240, %s241
      %p253 = scmp.eq.s32.totalorder %s37, 1
      %p254 = por %p252, %p253
      %p256 = scmp.ne.s32.totalorder %s241, %s255
      %p257 = scmp.eq.s32.totalorder %s37, 0
      %p258 = por %p256, %p257
      %s259 = ssub.s32 %s31, %s38
      %p260 = scmp.eq.s32.totalorder %s259, 0
      %s262 = sadd.s32 %s261, 1
      %s263 = scalar_select %p260, %s261, %s262
      %p266 = pneg %p260
      %p267 = scmp.eq.s32.totalorder %s31, 1
      %p268 = por %p266, %p267
      %p269 = scmp.ne.s32.totalorder %s261, %s264
      %p270 = scmp.eq.s32.totalorder %s31, 0
      %p271 = por %p269, %p270
      %p272 = scmp.ne.s32.totalorder %s261, %s264
      %p273 = scmp.eq.s32.totalorder %s36, 1
      %p274 = por %p272, %p273
      %p275 = scmp.ne.s32.totalorder %s264, %s265
      %p276 = scmp.eq.s32.totalorder %s36, 0
      %p277 = por %p275, %p276
      %p278 = scmp.ne.s32.totalorder %s264, %s265
      %p279 = scmp.eq.s32.totalorder %s37, 1
      %p280 = por %p278, %p279
      %p282 = scmp.ne.s32.totalorder %s265, %s281
      %p283 = scmp.eq.s32.totalorder %s37, 0
      %p284 = por %p282, %p283
      %s285 = ssub.s32 %s31, %s38
      %p286 = scmp.eq.s32.totalorder %s285, 0
      %s288 = sadd.s32 %s287, 1
      %s289 = scalar_select %p286, %s287, %s288
      %p292 = pneg %p286
      %p293 = scmp.eq.s32.totalorder %s31, 1
      %p294 = por %p292, %p293
      %p295 = scmp.ne.s32.totalorder %s287, %s290
      %p296 = scmp.eq.s32.totalorder %s31, 0
      %p297 = por %p295, %p296
      %p298 = scmp.ne.s32.totalorder %s287, %s290
      %p299 = scmp.eq.s32.totalorder %s36, 1
      %p300 = por %p298, %p299
      %p301 = scmp.ne.s32.totalorder %s290, %s291
      %p302 = scmp.eq.s32.totalorder %s36, 0
      %p303 = por %p301, %p302
      %p304 = scmp.ne.s32.totalorder %s290, %s291
      %p305 = scmp.eq.s32.totalorder %s37, 1
      %p306 = por %p304, %p305
      %p308 = scmp.ne.s32.totalorder %s291, %s307
      %p309 = scmp.eq.s32.totalorder %s37, 0
      %p310 = por %p308, %p309
      %p311 = scmp.le.s32.totalorder 1, %s31
      %p312 = scmp.lt.s32.totalorder %s31, 3
      %p313 = pnand %p311, %p312
      %p314 = pneg %p313
      // Predicated region
      $region9: #{tpu_custom_call.1} parent=5 // pred_check
        _
      $region10: #{tpu_custom_call.1} parent=5 // pred_check_branch
        %316 = sbr.rel (%p313) target = $region12
      $region11: #{tpu_custom_call.1} parent=5 // pred_region
        %s317 = ssub.s32 %s31, 1
        // Predicated region
        $region13: #{tpu_custom_call.1} parent=11 // pred_check
          %p318 = pneg %p104
        $region14: #{tpu_custom_call.1} parent=11 // pred_check_branch
          %320 = sbr.rel (%p318) target = $region16
        $region15: #{tpu_custom_call.1} parent=11 // pred_region
          %322 = vsyncadd [#allocation7], 0
          %s323 = sshll.u32 %s2, 4
          %s324 = int_to_ptr.hbm [resolvable:$true] %s323
          %s325 = sshll.u32 [#allocation8], 4
          %s326 = int_to_ptr.vmem [resolvable:$true] %s325
          %331 = dma.hbm_to_vmem [thread:$0]  %s324, 512, %s326, [#allocation7], 128, 128, 8
        $region16: #{tpu_custom_call.1} parent=11 // pred_fallthru
          _
        // Predicated region
        $region17: #{tpu_custom_call.1} parent=11 // pred_check
          %p332 = pneg %p125
        $region18: #{tpu_custom_call.1} parent=11 // pred_check_branch
          %334 = sbr.rel (%p332) target = $region20
        $region19: #{tpu_custom_call.1} parent=11 // pred_region
          %336 = vsyncadd [#allocation10], 0
          %s337 = sshll.u32 %s3, 4
          %s338 = int_to_ptr.hbm [resolvable:$true] %s337
          %s339 = sshll.u32 [#allocation9], 4
          %s340 = int_to_ptr.vmem [resolvable:$true] %s339
          %345 = dma.hbm_to_vmem [thread:$0]  %s338, 512, %s340, [#allocation10], 128, 128, 8
        $region20: #{tpu_custom_call.1} parent=11 // pred_fallthru
          _
        // Predicated region
        $region21: #{tpu_custom_call.1} parent=11 // pred_check
          %p346 = pneg %p146
        $region22: #{tpu_custom_call.1} parent=11 // pred_check_branch
          %348 = sbr.rel (%p346) target = $region24
        $region23: #{tpu_custom_call.1} parent=11 // pred_region
          %350 = vsyncadd [#allocation10], 0
          %s351 = sshll.u32 %s4, 4
          %s352 = int_to_ptr.hbm [resolvable:$true] %s351
          %s353 = sshll.u32 [#allocation11], 4
          %s354 = int_to_ptr.vmem [resolvable:$true] %s353
          %359 = dma.hbm_to_vmem [thread:$0]  %s352, 512, %s354, [#allocation10], 128, 128, 8
        $region24: #{tpu_custom_call.1} parent=11 // pred_fallthru
          _
        // Predicated region
        $region25: #{tpu_custom_call.1} parent=11 // pred_check
          %p360 = pneg %p167
        $region26: #{tpu_custom_call.1} parent=11 // pred_check_branch
          %362 = sbr.rel (%p360) target = $region28
        $region27: #{tpu_custom_call.1} parent=11 // pred_region
          _
        $region28: #{tpu_custom_call.1} parent=11 // pred_fallthru
          _
        // Predicated region
        $region29: #{tpu_custom_call.1} parent=11 // pred_check
          %p363 = pneg %p188
        $region30: #{tpu_custom_call.1} parent=11 // pred_check_branch
          %365 = sbr.rel (%p363) target = $region32
        $region31: #{tpu_custom_call.1} parent=11 // pred_region
          %367 = vsyncadd [#allocation13], 0
          %s368 = sshll.u32 %s6, 4
          %s369 = int_to_ptr.hbm [resolvable:$true] %s368
          %s370 = sshll.u32 [#allocation12], 4
          %s371 = int_to_ptr.vmem [resolvable:$true] %s370
          %376 = dma.hbm_to_vmem [thread:$0]  %s369, 1024, %s371, [#allocation13], 128, 128, 8
        $region32: #{tpu_custom_call.1} parent=11 // pred_fallthru
          _
        // Predicated region
        $region33: #{tpu_custom_call.1} parent=11 // pred_check
          %p377 = pneg %p209
        $region34: #{tpu_custom_call.1} parent=11 // pred_check_branch
          %379 = sbr.rel (%p377) target = $region36
        $region35: #{tpu_custom_call.1} parent=11 // pred_region
          _
        $region36: #{tpu_custom_call.1} parent=11 // pred_fallthru
          _
        // Predicated region
        $region37: #{tpu_custom_call.1} parent=11 // pred_check
          %p380 = pneg %p230
        $region38: #{tpu_custom_call.1} parent=11 // pred_check_branch
          %382 = sbr.rel (%p380) target = $region40
        $region39: #{tpu_custom_call.1} parent=11 // pred_region
          _
        $region40: #{tpu_custom_call.1} parent=11 // pred_fallthru
          _
        // Predicated region
        $region41: #{tpu_custom_call.1} parent=11 // pred_check
          %p383 = pneg %p251
        $region42: #{tpu_custom_call.1} parent=11 // pred_check_branch
          %385 = sbr.rel (%p383) target = $region44
        $region43: #{tpu_custom_call.1} parent=11 // pred_region
          _
        $region44: #{tpu_custom_call.1} parent=11 // pred_fallthru
          _
      $region12: #{tpu_custom_call.1} parent=5 // pred_fallthru
        _
      %p386 = scmp.lt.s32.totalorder %s31, 2
      // Predicated region
      $region45: #{tpu_custom_call.1} parent=5 // pred_check
        %p387 = pneg %p386
      $region46: #{tpu_custom_call.1} parent=5 // pred_check_branch
        %389 = sbr.rel (%p387) target = $region48
      $region47: #{tpu_custom_call.1} parent=5 // pred_region
        // Predicated region
        $region49: #{tpu_custom_call.1} parent=47 // pred_check
          %p390 = pneg %p51
        $region50: #{tpu_custom_call.1} parent=47 // pred_check_branch
          %392 = sbr.rel (%p390) target = $region52
        $region51: #{tpu_custom_call.1} parent=47 // pred_region
          %s393 = sand.u32 %s41, 1
          %s394 = scalar_lea.sflag [#allocation4], %s393
          %s395 = sand.u32 %s41, 1
          %s396 = smul.addr %s395, 8
          %s397 = scalar_lea.vmem [#allocation3], %s396
          %399 = vsyncadd %s394, 0
          %s400 = smul.addr %s31, 8
          %s401 = scalar_lea.hbm %s0, %s400
          %s403 = sshll.u32 %s401, 4
          %s404 = int_to_ptr.hbm [resolvable:$true] %s403
          %s405 = sshll.u32 %s397, 4
          %s406 = int_to_ptr.vmem [resolvable:$true] %s405
          %408 = dma.hbm_to_vmem [thread:$0]  %s404, 128, %s406, %s394
        $region52: #{tpu_custom_call.1} parent=47 // pred_fallthru
          _
        // Predicated region
        $region53: #{tpu_custom_call.1} parent=47 // pred_check
          %p409 = pneg %p77
        $region54: #{tpu_custom_call.1} parent=47 // pred_check_branch
          %411 = sbr.rel (%p409) target = $region56
        $region55: #{tpu_custom_call.1} parent=47 // pred_region
          %s412 = sand.u32 %s31, 1
          %s413 = scalar_lea.sflag [#allocation7], %s412
          %s414 = sand.u32 %s67, 1
          %s415 = smul.addr %s414, 64
          %s416 = scalar_lea.vmem [#allocation6], %s415
          %s417 = smul.u32 8, %s31
          %419 = vsyncadd %s413, 0
          %s420 = smul.addr %s417, 8
          %s421 = scalar_lea.hbm %s1, %s420
          %s422 = sshll.u32 %s421, 4
          %s423 = int_to_ptr.hbm [resolvable:$true] %s422
          %s424 = sshll.u32 %s416, 4
          %s425 = int_to_ptr.vmem [resolvable:$true] %s424
          %430 = dma.hbm_to_vmem [thread:$0]  %s423, 1024, %s425, %s413, 128, 128, 8
        $region56: #{tpu_custom_call.1} parent=47 // pred_fallthru
          _
      $region48: #{tpu_custom_call.1} parent=5 // pred_fallthru
        _
      %p431 = scmp.le.s32.totalorder 1, %s31
      %p432 = scmp.lt.s32.totalorder %s31, 3
      %p433 = pnand %p431, %p432
      %p434 = pneg %p433
      // Predicated region
      $region57: #{tpu_custom_call.1} parent=5 // pred_check
        _
      $region58: #{tpu_custom_call.1} parent=5 // pred_check_branch
        %436 = sbr.rel (%p433) target = $region60
      $region59: #{tpu_custom_call.1} parent=5 // pred_region
        %s437 = ssub.s32 %s31, 1
        %s438 = sand.u32 %s44, 1
        %s439 = scalar_lea.sflag [#allocation4], %s438
        %s440 = sand.u32 %s44, 1
        %s441 = smul.addr %s440, 8
        %s442 = scalar_lea.vmem [#allocation3], %s441
        // Predicated region
        $region61: #{tpu_custom_call.1} parent=59 // pred_check
          %p443 = pneg %p57
        $region62: #{tpu_custom_call.1} parent=59 // pred_check_branch
          %445 = sbr.rel (%p443) target = $region64
        $region63: #{tpu_custom_call.1} parent=59 // pred_region
          %447 = dma.done %s439, 128
        $region64: #{tpu_custom_call.1} parent=59 // pred_fallthru
          _
        %s448 = sand.u32 %s36, 1
        %s449 = scalar_lea.sflag [#allocation7], %s448
        %s450 = sand.u32 %s70, 1
        %s451 = smul.addr %s450, 64
        %s452 = scalar_lea.vmem [#allocation6], %s451
        // Predicated region
        $region65: #{tpu_custom_call.1} parent=59 // pred_check
          %p453 = pneg %p83
        $region66: #{tpu_custom_call.1} parent=59 // pred_check_branch
          %455 = sbr.rel (%p453) target = $region68
        $region67: #{tpu_custom_call.1} parent=59 // pred_region
          %457 = dma.done %s449, 1024
        $region68: #{tpu_custom_call.1} parent=59 // pred_fallthru
          _
        // Predicated region
        $region69: #{tpu_custom_call.1} parent=59 // pred_check
          %p458 = pneg %p104
        $region70: #{tpu_custom_call.1} parent=59 // pred_check_branch
          %460 = sbr.rel (%p458) target = $region72
        $region71: #{tpu_custom_call.1} parent=59 // pred_region
          %462 = dma.done [#allocation7], 512
        $region72: #{tpu_custom_call.1} parent=59 // pred_fallthru
          _
        // Predicated region
        $region73: #{tpu_custom_call.1} parent=59 // pred_check
          %p463 = pneg %p125
        $region74: #{tpu_custom_call.1} parent=59 // pred_check_branch
          %465 = sbr.rel (%p463) target = $region76
        $region75: #{tpu_custom_call.1} parent=59 // pred_region
          %467 = dma.done [#allocation10], 512
        $region76: #{tpu_custom_call.1} parent=59 // pred_fallthru
          _
        // Predicated region
        $region77: #{tpu_custom_call.1} parent=59 // pred_check
          %p468 = pneg %p146
        $region78: #{tpu_custom_call.1} parent=59 // pred_check_branch
          %470 = sbr.rel (%p468) target = $region80
        $region79: #{tpu_custom_call.1} parent=59 // pred_region
          %472 = dma.done [#allocation10], 512
        $region80: #{tpu_custom_call.1} parent=59 // pred_fallthru
          _
        // Predicated region
        $region81: #{tpu_custom_call.1} parent=59 // pred_check
          %p473 = pneg %p188
        $region82: #{tpu_custom_call.1} parent=59 // pred_check_branch
          %475 = sbr.rel (%p473) target = $region84
        $region83: #{tpu_custom_call.1} parent=59 // pred_region
          %477 = dma.done [#allocation13], 1024
        $region84: #{tpu_custom_call.1} parent=59 // pred_fallthru
          _
        %s478 = sand.u32 %s44, 1
        %s479 = scalar_lea.sflag [#allocation4], %s478
        %s480 = sand.u32 %s44, 1
        %s481 = smul.addr %s480, 8
        %s482 = scalar_lea.vmem [#allocation3], %s481
        %p483 = pneg %p57
        %p484 = pneg %p54
        %s485 = sand.u32 %s36, 1
        %s486 = scalar_lea.sflag [#allocation7], %s485
        %s487 = sand.u32 %s70, 1
        %s488 = smul.addr %s487, 64
        %s489 = scalar_lea.vmem [#allocation6], %s488
        %p490 = pneg %p83
        %p491 = pneg %p80
        %p492 = pneg %p104
        %p493 = pneg %p101
        %p494 = pneg %p125
        %p495 = pneg %p122
        %p496 = pneg %p146
        %p497 = pneg %p143
        %p498 = pneg %p167
        %p499 = pneg %p164
        %p500 = pneg %p188
        %p501 = pneg %p185
        %p502 = pneg %p209
        %p503 = pneg %p206
        %p504 = pneg %p230
        %p505 = pneg %p227
        %p506 = pneg %p251
        %p507 = pneg %p248
        %p508 = pneg %p277
        %p509 = pneg %p274
        %s510 = sand.u32 %s264, 1
        %s511 = scalar_lea.sflag [#allocation5], %s510
        %s512 = sand.u32 %s264, 1
        %s513 = smul.addr %s512, 8
        %s514 = scalar_lea.vmem [#allocation14], %s513
        %p515 = pneg %p303
        %p516 = pneg %p300
        %p517 = scmp.lt.s32.totalorder %s36, 1
        %s518 = scalar_select %p517, %s36, 1
        %s519 = smul.addr %s518, 8
        %s520 = scalar_lea.vmem %s11, %s519
        %s521 = smul.u32 8, %s36
        %p522 = scmp.lt.s32.totalorder %s36, 1
        %s523 = scalar_select %p522, %s36, 1
        %s524 = smul.addr %s523, 8
        %s525 = scalar_lea.vmem %s11, %s524
        %v526 = vld [vmem:[%s442] sm:$0xff]
        %v527 = vld [vmem:[%s452] sm:$0xff]
        %v528 = vld [vmem:[%s452 + $0x8] sm:$0xff]
        %v529 = vld [vmem:[%s452 + $0x10] sm:$0xff]
        %v530 = vld [vmem:[%s452 + $0x18] sm:$0xff]
        %v531 = vld [vmem:[%s452 + $0x20] sm:$0xff]
        %v532 = vld [vmem:[%s452 + $0x28] sm:$0xff]
        %v533 = vld [vmem:[%s452 + $0x30] sm:$0xff]
        %v534 = vld [vmem:[%s452 + $0x38] sm:$0xff]
        %v536 = vrot.slane %v526, 1
        %v537 = vrot.slane %v526, 2
        %v538 = vrot.slane %v526, 3
        %v539 = vrot.slane %v526, 4
        %v540 = vrot.slane %v526, 5
        %v541 = vrot.slane %v526, 6
        %v542 = vrot.slane %v526, 7
        %v543 = vperm.slane %v526, 0
        %v544 = vperm.slane %v536, 0
        %v545 = vperm.slane %v537, 0
        %v546 = vperm.slane %v538, 0
        %v547 = vperm.slane %v539, 0
        %v548 = vperm.slane %v540, 0
        %v549 = vperm.slane %v541, 0
        %v550 = vperm.slane %v542, 0
        %v559 = vmul.f32 %v527, %v543
        %v560 = vmul.f32 %v528, %v544
        %v561 = vmul.f32 %v529, %v545
        %v562 = vmul.f32 %v530, %v546
        %v563 = vmul.f32 %v531, %v547
        %v564 = vmul.f32 %v532, %v548
        %v565 = vmul.f32 %v533, %v549
        %v566 = vmul.f32 %v534, %v550
        %v567 = vld [vmem:[#allocation8] sm:$0xff]
        %v568 = vld [vmem:[#allocation8 + $0x8] sm:$0xff]
        %v569 = vld [vmem:[#allocation8 + $0x10] sm:$0xff]
        %v570 = vld [vmem:[#allocation8 + $0x18] sm:$0xff]
        %v571 = vld [vmem:[%s5] sm:$0x1]
        %v573 = vperm.slane %v571, 0
        %vm575 = vcmask 261120
        %v576 = vsel %vm575, %v526, 0
        %578 = vmatpush.msra.mxu0 0.0
        %579 = vmatpush.msra.mxu0 0.0
        %580 = vmatpush.msra.mxu0 0.0
        %581 = vmatpush.msra.mxu0 0.0
        %582 = vmatpush.msra.mxu0 0.0
        %583 = vmatpush.msra.mxu0 0.0
        %584 = vmatpush.msra.mxu0 0.0
        %585 = vmatpush.msra.mxu0 0.0
        %586 = vmatpush.msra.mxu0 0.0
        %587 = vmatpush.msra.mxu0 0.0
        %588 = vmatpush.msra.mxu0 0.0
        %589 = vmatpush.msra.mxu0 0.0
        %590 = vmatpush.msra.mxu0 %v570
        %591 = vmatpush.msra.mxu0 %v569
        %592 = vmatpush.msra.mxu0 %v568
        %593 = vmatpush.msra.mxu0 %v567
        %594 = vmatmul.f32.gmra.mxu0 %v576
        %v595 = vpop.f32.mrf.mxu0
        %v596 = vadd.f32 %v573, %v595
        %597 = vdwg.mxu0
        %v598 = vld [vmem:[#allocation9] sm:$0xff]
        %v599 = vld [vmem:[#allocation9 + $0x8] sm:$0xff]
        %v600 = vld [vmem:[#allocation9 + $0x10] sm:$0xff]
        %v601 = vld [vmem:[#allocation9 + $0x18] sm:$0xff]
        %v602 = vld [vmem:[#allocation11] sm:$0xff]
        %v603 = vld [vmem:[#allocation11 + $0x8] sm:$0xff]
        %v604 = vld [vmem:[#allocation11 + $0x10] sm:$0xff]
        %v605 = vld [vmem:[#allocation11 + $0x18] sm:$0xff]
        %v607 = vsel %vm575, %v559, 0
        %v610 = vsel %vm575, %v560, 0
        %v613 = vsel %vm575, %v561, 0
        %v616 = vsel %vm575, %v562, 0
        %v619 = vsel %vm575, %v563, 0
        %v622 = vsel %vm575, %v564, 0
        %v625 = vsel %vm575, %v565, 0
        %v628 = vsel %vm575, %v566, 0
        %630 = vmatpush.msra.mxu0 0.0
        %631 = vmatpush.msra.mxu0 0.0
        %632 = vmatpush.msra.mxu0 0.0
        %633 = vmatpush.msra.mxu0 0.0
        %634 = vmatpush.msra.mxu0 0.0
        %635 = vmatpush.msra.mxu0 0.0
        %636 = vmatpush.msra.mxu0 0.0
        %637 = vmatpush.msra.mxu0 0.0
        %638 = vmatpush.msra.mxu0 0.0
        %639 = vmatpush.msra.mxu0 0.0
        %640 = vmatpush.msra.mxu0 0.0
        %641 = vmatpush.msra.mxu0 0.0
        %642 = vmatpush.msra.mxu0 %v605
        %643 = vmatpush.msra.mxu0 %v604
        %644 = vmatpush.msra.mxu0 %v603
        %645 = vmatpush.msra.mxu0 %v602
        %646 = vmatmul.f32.gmra.mxu0 %v607
        %v647 = vpop.f32.mrf.mxu0
        %v648 = vadd.f32 0.0, %v647
        %649 = vmatmul.f32.gmra.mxu0 %v610
        %v650 = vpop.f32.mrf.mxu0
        %v651 = vadd.f32 0.0, %v650
        %652 = vmatmul.f32.gmra.mxu0 %v613
        %v653 = vpop.f32.mrf.mxu0
        %v654 = vadd.f32 0.0, %v653
        %655 = vmatmul.f32.gmra.mxu0 %v616
        %v656 = vpop.f32.mrf.mxu0
        %v657 = vadd.f32 0.0, %v656
        %658 = vmatmul.f32.gmra.mxu0 %v619
        %v659 = vpop.f32.mrf.mxu0
        %v660 = vadd.f32 0.0, %v659
        %661 = vmatmul.f32.gmra.mxu0 %v622
        %v662 = vpop.f32.mrf.mxu0
        %v663 = vadd.f32 0.0, %v662
        %664 = vmatmul.f32.gmra.mxu0 %v625
        %v665 = vpop.f32.mrf.mxu0
        %v666 = vadd.f32 0.0, %v665
        %667 = vmatmul.f32.gmra.mxu0 %v628
        %v668 = vpop.f32.mrf.mxu0
        %v669 = vadd.f32 0.0, %v668
        %670 = vdwg.mxu0
        %v672 = vsel %vm575, %v527, 0
        %v675 = vsel %vm575, %v528, 0
        %v678 = vsel %vm575, %v529, 0
        %v681 = vsel %vm575, %v530, 0
        %v684 = vsel %vm575, %v531, 0
        %v687 = vsel %vm575, %v532, 0
        %v690 = vsel %vm575, %v533, 0
        %v693 = vsel %vm575, %v534, 0
        %695 = vmatpush.msra.mxu0 0.0
        %696 = vmatpush.msra.mxu0 0.0
        %697 = vmatpush.msra.mxu0 0.0
        %698 = vmatpush.msra.mxu0 0.0
        %699 = vmatpush.msra.mxu0 0.0
        %700 = vmatpush.msra.mxu0 0.0
        %701 = vmatpush.msra.mxu0 0.0
        %702 = vmatpush.msra.mxu0 0.0
        %703 = vmatpush.msra.mxu0 0.0
        %704 = vmatpush.msra.mxu0 0.0
        %705 = vmatpush.msra.mxu0 0.0
        %706 = vmatpush.msra.mxu0 0.0
        %707 = vmatpush.msra.mxu0 %v601
        %708 = vmatpush.msra.mxu0 %v600
        %709 = vmatpush.msra.mxu0 %v599
        %710 = vmatpush.msra.mxu0 %v598
        %711 = vmatmul.f32.gmra.mxu0 %v672
        %v712 = vpop.f32.mrf.mxu0
        %v713 = vadd.f32 %v648, %v712
        %714 = vmatmul.f32.gmra.mxu0 %v675
        %v715 = vpop.f32.mrf.mxu0
        %v716 = vadd.f32 %v651, %v715
        %717 = vmatmul.f32.gmra.mxu0 %v678
        %v718 = vpop.f32.mrf.mxu0
        %v719 = vadd.f32 %v654, %v718
        %720 = vmatmul.f32.gmra.mxu0 %v681
        %v721 = vpop.f32.mrf.mxu0
        %v722 = vadd.f32 %v657, %v721
        %723 = vmatmul.f32.gmra.mxu0 %v684
        %v724 = vpop.f32.mrf.mxu0
        %v725 = vadd.f32 %v660, %v724
        %726 = vmatmul.f32.gmra.mxu0 %v687
        %v727 = vpop.f32.mrf.mxu0
        %v728 = vadd.f32 %v663, %v727
        %729 = vmatmul.f32.gmra.mxu0 %v690
        %v730 = vpop.f32.mrf.mxu0
        %v731 = vadd.f32 %v666, %v730
        %732 = vmatmul.f32.gmra.mxu0 %v693
        %v733 = vpop.f32.mrf.mxu0
        %v734 = vadd.f32 %v669, %v733
        %735 = vdwg.mxu0
        %v737 = vrot.slane %v596, 1
        %v738 = vrot.slane %v596, 2
        %v739 = vrot.slane %v596, 3
        %v740 = vrot.slane %v596, 4
        %v741 = vrot.slane %v596, 5
        %v742 = vrot.slane %v596, 6
        %v743 = vrot.slane %v596, 7
        %v744 = vperm.slane %v596, 0
        %v745 = vperm.slane %v737, 0
        %v746 = vperm.slane %v738, 0
        %v747 = vperm.slane %v739, 0
        %v748 = vperm.slane %v740, 0
        %v749 = vperm.slane %v741, 0
        %v750 = vperm.slane %v742, 0
        %v751 = vperm.slane %v743, 0
        %v760 = vadd.f32 %v713, %v744
        %v761 = vadd.f32 %v716, %v745
        %v762 = vadd.f32 %v719, %v746
        %v763 = vadd.f32 %v722, %v747
        %v764 = vadd.f32 %v725, %v748
        %v765 = vadd.f32 %v728, %v749
        %v766 = vadd.f32 %v731, %v750
        %v767 = vadd.f32 %v734, %v751
        %v768 = vld [vmem:[#allocation12] sm:$0xff]
        %v769 = vld [vmem:[#allocation12 + $0x8] sm:$0xff]
        %v770 = vld [vmem:[#allocation12 + $0x10] sm:$0xff]
        %v771 = vld [vmem:[#allocation12 + $0x18] sm:$0xff]
        %v772 = vld [vmem:[#allocation12 + $0x20] sm:$0xff]
        %v773 = vld [vmem:[#allocation12 + $0x28] sm:$0xff]
        %v774 = vld [vmem:[#allocation12 + $0x30] sm:$0xff]
        %v775 = vld [vmem:[#allocation12 + $0x38] sm:$0xff]
        %v776 = vld [vmem:[%s7] sm:$0x1]
        %v778 = vperm.slane %v776, 0
        %vm780 = vcmask 523264
        %v782 = vsel %vm780, %v760, 0
        %v785 = vsel %vm780, %v761, 0
        %v788 = vsel %vm780, %v762, 0
        %v791 = vsel %vm780, %v763, 0
        %v794 = vsel %vm780, %v764, 0
        %v797 = vsel %vm780, %v765, 0
        %v800 = vsel %vm780, %v766, 0
        %v803 = vsel %vm780, %v767, 0
        %805 = vmatpush.msra.mxu0 0.0
        %806 = vmatpush.msra.mxu0 0.0
        %807 = vmatpush.msra.mxu0 0.0
        %808 = vmatpush.msra.mxu0 0.0
        %809 = vmatpush.msra.mxu0 0.0
        %810 = vmatpush.msra.mxu0 0.0
        %811 = vmatpush.msra.mxu0 0.0
        %812 = vmatpush.msra.mxu0 0.0
        %813 = vmatpush.msra.mxu0 %v775
        %814 = vmatpush.msra.mxu0 %v774
        %815 = vmatpush.msra.mxu0 %v773
        %816 = vmatpush.msra.mxu0 %v772
        %817 = vmatpush.msra.mxu0 %v771
        %818 = vmatpush.msra.mxu0 %v770
        %819 = vmatpush.msra.mxu0 %v769
        %820 = vmatpush.msra.mxu0 %v768
        %821 = vmatmul.f32.gmra.mxu0 %v782
        %v822 = vpop.f32.mrf.mxu0
        %v823 = vadd.f32 %v778, %v822
        %824 = vmatmul.f32.gmra.mxu0 %v785
        %v825 = vpop.f32.mrf.mxu0
        %v826 = vadd.f32 %v778, %v825
        %827 = vmatmul.f32.gmra.mxu0 %v788
        %v828 = vpop.f32.mrf.mxu0
        %v829 = vadd.f32 %v778, %v828
        %830 = vmatmul.f32.gmra.mxu0 %v791
        %v831 = vpop.f32.mrf.mxu0
        %v832 = vadd.f32 %v778, %v831
        %833 = vmatmul.f32.gmra.mxu0 %v794
        %v834 = vpop.f32.mrf.mxu0
        %v835 = vadd.f32 %v778, %v834
        %836 = vmatmul.f32.gmra.mxu0 %v797
        %v837 = vpop.f32.mrf.mxu0
        %v838 = vadd.f32 %v778, %v837
        %839 = vmatmul.f32.gmra.mxu0 %v800
        %v840 = vpop.f32.mrf.mxu0
        %v841 = vadd.f32 %v778, %v840
        %842 = vmatmul.f32.gmra.mxu0 %v803
        %v843 = vpop.f32.mrf.mxu0
        %v844 = vadd.f32 %v778, %v843
        %845 = vdwg.mxu0
        %854 = vrot.lane.b32.xlu0 %v823, 96
        %v855 = vpop.permute.xlu0 %854
        %856 = vrot.lane.b32.xlu0 %v826, 96
        %v857 = vpop.permute.xlu0 %856
        %858 = vrot.lane.b32.xlu0 %v829, 96
        %v859 = vpop.permute.xlu0 %858
        %860 = vrot.lane.b32.xlu0 %v832, 96
        %v861 = vpop.permute.xlu0 %860
        %862 = vrot.lane.b32.xlu0 %v835, 96
        %v863 = vpop.permute.xlu0 %862
        %864 = vrot.lane.b32.xlu0 %v838, 96
        %v865 = vpop.permute.xlu0 %864
        %866 = vrot.lane.b32.xlu0 %v841, 96
        %v867 = vpop.permute.xlu0 %866
        %868 = vrot.lane.b32.xlu0 %v844, 96
        %v869 = vpop.permute.xlu0 %868
        %v878 = vmul.f32 %v823, %v855
        %v879 = vmul.f32 %v826, %v857
        %v880 = vmul.f32 %v829, %v859
        %v881 = vmul.f32 %v832, %v861
        %v882 = vmul.f32 %v835, %v863
        %v883 = vmul.f32 %v838, %v865
        %v884 = vmul.f32 %v841, %v867
        %v885 = vmul.f32 %v844, %v869
        %v886 = vxor.u32 %v823, 2147483648
        %v887 = vxor.u32 %v826, 2147483648
        %v888 = vxor.u32 %v829, 2147483648
        %v889 = vxor.u32 %v832, 2147483648
        %v890 = vxor.u32 %v835, 2147483648
        %v891 = vxor.u32 %v838, 2147483648
        %v892 = vxor.u32 %v841, 2147483648
        %v893 = vxor.u32 %v844, 2147483648
        %v894 = vmul.f32 %v886, 1.442695
        %v895 = vpow.pop %v894
        %v896 = vmul.f32 %v887, 1.442695
        %v897 = vpow.pop %v896
        %v898 = vmul.f32 %v888, 1.442695
        %v899 = vpow.pop %v898
        %v900 = vmul.f32 %v889, 1.442695
        %v901 = vpow.pop %v900
        %v902 = vmul.f32 %v890, 1.442695
        %v903 = vpow.pop %v902
        %v904 = vmul.f32 %v891, 1.442695
        %v905 = vpow.pop %v904
        %v906 = vmul.f32 %v892, 1.442695
        %v907 = vpow.pop %v906
        %v908 = vmul.f32 %v893, 1.442695
        %v909 = vpow.pop %v908
        %v910 = vadd.f32 %v895, 1.0
        %v911 = vadd.f32 %v897, 1.0
        %v912 = vadd.f32 %v899, 1.0
        %v913 = vadd.f32 %v901, 1.0
        %v914 = vadd.f32 %v903, 1.0
        %v915 = vadd.f32 %v905, 1.0
        %v916 = vadd.f32 %v907, 1.0
        %v917 = vadd.f32 %v909, 1.0
        %v918 = vrcp.pop %v910
        %v919 = vmul.f32 %v910, %v918
        %v920 = vsub.f32 1.0, %v919
        %v921 = vmul.f32 %v918, %v920
        %v922 = vadd.f32 %v918, %v921
        %vm923 = vweird.f32 %v910
        %vm924 = vweird.f32 %v918
        %vm925 = vmor %vm923, %vm924
        %v926 = vsel %vm925, %v918, %v922
        %v927 = vand.u32 2147483647, %v910
        %vm928 = vcmp.eq.f32.partialorder %v927, 8.507059e+37
        %v929 = vand.u32 %v910, 2147483648
        %v930 = vor.u32 1.1754944e-38, %v929
        %v931 = vsel %vm928, %v930, %v926
        %v932 = vmul.f32 1.0, %v931
        %v933 = vrcp.pop %v911
        %v934 = vmul.f32 %v911, %v933
        %v935 = vsub.f32 1.0, %v934
        %v936 = vmul.f32 %v933, %v935
        %v937 = vadd.f32 %v933, %v936
        %vm938 = vweird.f32 %v911
        %vm939 = vweird.f32 %v933
        %vm940 = vmor %vm938, %vm939
        %v941 = vsel %vm940, %v933, %v937
        %v942 = vand.u32 2147483647, %v911
        %vm943 = vcmp.eq.f32.partialorder %v942, 8.507059e+37
        %v944 = vand.u32 %v911, 2147483648
        %v945 = vor.u32 1.1754944e-38, %v944
        %v946 = vsel %vm943, %v945, %v941
        %v947 = vmul.f32 1.0, %v946
        %v948 = vrcp.pop %v912
        %v949 = vmul.f32 %v912, %v948
        %v950 = vsub.f32 1.0, %v949
        %v951 = vmul.f32 %v948, %v950
        %v952 = vadd.f32 %v948, %v951
        %vm953 = vweird.f32 %v912
        %vm954 = vweird.f32 %v948
        %vm955 = vmor %vm953, %vm954
        %v956 = vsel %vm955, %v948, %v952
        %v957 = vand.u32 2147483647, %v912
        %vm958 = vcmp.eq.f32.partialorder %v957, 8.507059e+37
        %v959 = vand.u32 %v912, 2147483648
        %v960 = vor.u32 1.1754944e-38, %v959
        %v961 = vsel %vm958, %v960, %v956
        %v962 = vmul.f32 1.0, %v961
        %v963 = vrcp.pop %v913
        %v964 = vmul.f32 %v913, %v963
        %v965 = vsub.f32 1.0, %v964
        %v966 = vmul.f32 %v963, %v965
        %v967 = vadd.f32 %v963, %v966
        %vm968 = vweird.f32 %v913
        %vm969 = vweird.f32 %v963
        %vm970 = vmor %vm968, %vm969
        %v971 = vsel %vm970, %v963, %v967
        %v972 = vand.u32 2147483647, %v913
        %vm973 = vcmp.eq.f32.partialorder %v972, 8.507059e+37
        %v974 = vand.u32 %v913, 2147483648
        %v975 = vor.u32 1.1754944e-38, %v974
        %v976 = vsel %vm973, %v975, %v971
        %v977 = vmul.f32 1.0, %v976
        %v978 = vrcp.pop %v914
        %v979 = vmul.f32 %v914, %v978
        %v980 = vsub.f32 1.0, %v979
        %v981 = vmul.f32 %v978, %v980
        %v982 = vadd.f32 %v978, %v981
        %vm983 = vweird.f32 %v914
        %vm984 = vweird.f32 %v978
        %vm985 = vmor %vm983, %vm984
        %v986 = vsel %vm985, %v978, %v982
        %v987 = vand.u32 2147483647, %v914
        %vm988 = vcmp.eq.f32.partialorder %v987, 8.507059e+37
        %v989 = vand.u32 %v914, 2147483648
        %v990 = vor.u32 1.1754944e-38, %v989
        %v991 = vsel %vm988, %v990, %v986
        %v992 = vmul.f32 1.0, %v991
        %v993 = vrcp.pop %v915
        %v994 = vmul.f32 %v915, %v993
        %v995 = vsub.f32 1.0, %v994
        %v996 = vmul.f32 %v993, %v995
        %v997 = vadd.f32 %v993, %v996
        %vm998 = vweird.f32 %v915
        %vm999 = vweird.f32 %v993
        %vm1000 = vmor %vm998, %vm999
        %v1001 = vsel %vm1000, %v993, %v997
        %v1002 = vand.u32 2147483647, %v915
        %vm1003 = vcmp.eq.f32.partialorder %v1002, 8.507059e+37
        %v1004 = vand.u32 %v915, 2147483648
        %v1005 = vor.u32 1.1754944e-38, %v1004
        %v1006 = vsel %vm1003, %v1005, %v1001
        %v1007 = vmul.f32 1.0, %v1006
        %v1008 = vrcp.pop %v916
        %v1009 = vmul.f32 %v916, %v1008
        %v1010 = vsub.f32 1.0, %v1009
        %v1011 = vmul.f32 %v1008, %v1010
        %v1012 = vadd.f32 %v1008, %v1011
        %vm1013 = vweird.f32 %v916
        %vm1014 = vweird.f32 %v1008
        %vm1015 = vmor %vm1013, %vm1014
        %v1016 = vsel %vm1015, %v1008, %v1012
        %v1017 = vand.u32 2147483647, %v916
        %vm1018 = vcmp.eq.f32.partialorder %v1017, 8.507059e+37
        %v1019 = vand.u32 %v916, 2147483648
        %v1020 = vor.u32 1.1754944e-38, %v1019
        %v1021 = vsel %vm1018, %v1020, %v1016
        %v1022 = vmul.f32 1.0, %v1021
        %v1023 = vrcp.pop %v917
        %v1024 = vmul.f32 %v917, %v1023
        %v1025 = vsub.f32 1.0, %v1024
        %v1026 = vmul.f32 %v1023, %v1025
        %v1027 = vadd.f32 %v1023, %v1026
        %vm1028 = vweird.f32 %v917
        %vm1029 = vweird.f32 %v1023
        %vm1030 = vmor %vm1028, %vm1029
        %v1031 = vsel %vm1030, %v1023, %v1027
        %v1032 = vand.u32 2147483647, %v917
        %vm1033 = vcmp.eq.f32.partialorder %v1032, 8.507059e+37
        %v1034 = vand.u32 %v917, 2147483648
        %v1035 = vor.u32 1.1754944e-38, %v1034
        %v1036 = vsel %vm1033, %v1035, %v1031
        %v1037 = vmul.f32 1.0, %v1036
        %1046 = vrot.lane.b32.xlu0 %v932, 96
        %v1047 = vpop.permute.xlu0 %1046
        %1048 = vrot.lane.b32.xlu0 %v947, 96
        %v1049 = vpop.permute.xlu0 %1048
        %1050 = vrot.lane.b32.xlu0 %v962, 96
        %v1051 = vpop.permute.xlu0 %1050
        %1052 = vrot.lane.b32.xlu0 %v977, 96
        %v1053 = vpop.permute.xlu0 %1052
        %1054 = vrot.lane.b32.xlu0 %v992, 96
        %v1055 = vpop.permute.xlu0 %1054
        %1056 = vrot.lane.b32.xlu0 %v1007, 96
        %v1057 = vpop.permute.xlu0 %1056
        %1058 = vrot.lane.b32.xlu0 %v1022, 96
        %v1059 = vpop.permute.xlu0 %1058
        %1060 = vrot.lane.b32.xlu0 %v1037, 96
        %v1061 = vpop.permute.xlu0 %1060
        %v1070 = vmul.f32 %v878, %v1047
        %v1071 = vmul.f32 %v879, %v1049
        %v1072 = vmul.f32 %v880, %v1051
        %v1073 = vmul.f32 %v881, %v1053
        %v1074 = vmul.f32 %v882, %v1055
        %v1075 = vmul.f32 %v883, %v1057
        %v1076 = vmul.f32 %v884, %v1059
        %v1077 = vmul.f32 %v885, %v1061
        %v1078 = vld [vmem:[%s8] sm:$0x1]
        %v1080 = vperm.slane %v1078, 0
        %v1082 = vmul.f32 %v1070, %v1080
        %v1083 = vmul.f32 %v1071, %v1080
        %v1084 = vmul.f32 %v1072, %v1080
        %v1085 = vmul.f32 %v1073, %v1080
        %v1086 = vmul.f32 %v1074, %v1080
        %v1087 = vmul.f32 %v1075, %v1080
        %v1088 = vmul.f32 %v1076, %v1080
        %v1089 = vmul.f32 %v1077, %v1080
        %v1090 = vsel %vm575, %v1082, 0.0
        %1091 = vadd.xlane.f32.xlu0 %v1090
        %v1092 = vpop.xlane.xlu0 %1091
        %v1093 = vsel %vm575, %v1083, 0.0
        %1094 = vadd.xlane.f32.xlu0 %v1093
        %v1095 = vpop.xlane.xlu0 %1094
        %v1096 = vsel %vm575, %v1084, 0.0
        %1097 = vadd.xlane.f32.xlu0 %v1096
        %v1098 = vpop.xlane.xlu0 %1097
        %v1099 = vsel %vm575, %v1085, 0.0
        %1100 = vadd.xlane.f32.xlu0 %v1099
        %v1101 = vpop.xlane.xlu0 %1100
        %v1102 = vsel %vm575, %v1086, 0.0
        %1103 = vadd.xlane.f32.xlu0 %v1102
        %v1104 = vpop.xlane.xlu0 %1103
        %v1105 = vsel %vm575, %v1087, 0.0
        %1106 = vadd.xlane.f32.xlu0 %v1105
        %v1107 = vpop.xlane.xlu0 %1106
        %v1108 = vsel %vm575, %v1088, 0.0
        %1109 = vadd.xlane.f32.xlu0 %v1108
        %v1110 = vpop.xlane.xlu0 %1109
        %v1111 = vsel %vm575, %v1089, 0.0
        %1112 = vadd.xlane.f32.xlu0 %v1111
        %v1113 = vpop.xlane.xlu0 %1112
        %v1114 = vld [vmem:[#allocation2] sm:$0x1]
        %v1116 = vperm.slane %v1114, 0
        %1117 = vset.pattern.permute.xlu0 0
        %1118 = vperm.xlu0 %1117, %v1116
        %v1119 = vpop.permute.xlu0 %1118
        %v1121 = vadd.f32 %v1092, %v1119
        %v1122 = vadd.f32 %v1095, %v1119
        %v1123 = vadd.f32 %v1098, %v1119
        %v1124 = vadd.f32 %v1101, %v1119
        %v1125 = vadd.f32 %v1104, %v1119
        %v1126 = vadd.f32 %v1107, %v1119
        %v1127 = vadd.f32 %v1110, %v1119
        %v1128 = vadd.f32 %v1113, %v1119
        %v1137 = vlaneseq
        %v1138 = vand.u32 %v1137, 127
        %v1139 = vperm.slane %v1121, %v1138
        %v1140 = vperm.slane %v1122, %v1138
        %v1141 = vperm.slane %v1123, %v1138
        %v1142 = vperm.slane %v1124, %v1138
        %v1143 = vperm.slane %v1125, %v1138
        %v1144 = vperm.slane %v1126, %v1138
        %v1145 = vperm.slane %v1127, %v1138
        %v1146 = vperm.slane %v1128, %v1138
        %vm1147 = vcmask 1041409
        %v1148 = vsel %vm1147, %v1140, %v1139
        %vm1149 = vcmask 1042434
        %v1150 = vsel %vm1149, %v1141, %v1148
        %vm1151 = vcmask 1043459
        %v1152 = vsel %vm1151, %v1142, %v1150
        %vm1153 = vcmask 1044484
        %v1154 = vsel %vm1153, %v1143, %v1152
        %vm1155 = vcmask 1045509
        %v1156 = vsel %vm1155, %v1144, %v1154
        %vm1157 = vcmask 1046534
        %v1158 = vsel %vm1157, %v1145, %v1156
        %vm1159 = vcmask 1047559
        %v1160 = vsel %vm1159, %v1146, %v1158
        %vm1162 = vcmask 64512
        %1163 = vst.msk [vmem:[%s525] sm:$0xff] %vm1162, %v1160
        %v1164 = vsel %vm1162, %v1160, -inf
        %1165 = vmax.xlane.f32.xlu0 %v1164
        %v1166 = vpop.xlane.xlu0 %1165
        %v1168 = vperm.slane %v1166, 0
        %v1169 = vperm.slane %v1166, 1
        %v1170 = vperm.slane %v1166, 2
        %v1171 = vperm.slane %v1166, 3
        %v1172 = vperm.slane %v1166, 4
        %v1173 = vperm.slane %v1166, 5
        %v1174 = vperm.slane %v1166, 6
        %v1175 = vperm.slane %v1166, 7
        %v1184 = vsub.f32 %v1121, %v1168
        %v1185 = vsub.f32 %v1122, %v1169
        %v1186 = vsub.f32 %v1123, %v1170
        %v1187 = vsub.f32 %v1124, %v1171
        %v1188 = vsub.f32 %v1125, %v1172
        %v1189 = vsub.f32 %v1126, %v1173
        %v1190 = vsub.f32 %v1127, %v1174
        %v1191 = vsub.f32 %v1128, %v1175
        %v1192 = vmul.f32 %v1184, 1.442695
        %v1193 = vpow.pop %v1192
        %v1194 = vmul.f32 %v1185, 1.442695
        %v1195 = vpow.pop %v1194
        %v1196 = vmul.f32 %v1186, 1.442695
        %v1197 = vpow.pop %v1196
        %v1198 = vmul.f32 %v1187, 1.442695
        %v1199 = vpow.pop %v1198
        %v1200 = vmul.f32 %v1188, 1.442695
        %v1201 = vpow.pop %v1200
        %v1202 = vmul.f32 %v1189, 1.442695
        %v1203 = vpow.pop %v1202
        %v1204 = vmul.f32 %v1190, 1.442695
        %v1205 = vpow.pop %v1204
        %v1206 = vmul.f32 %v1191, 1.442695
        %v1207 = vpow.pop %v1206
        %1216 = vset.pattern.permute.xlu0 0
        %1217 = vperm.xlu0 %1216, %v1193
        %v1218 = vpop.permute.xlu0 %1217
        %1219 = vset.pattern.permute.xlu0 0
        %1220 = vperm.xlu0 %1219, %v1195
        %v1221 = vpop.permute.xlu0 %1220
        %1222 = vset.pattern.permute.xlu0 0
        %1223 = vperm.xlu0 %1222, %v1197
        %v1224 = vpop.permute.xlu0 %1223
        %1225 = vset.pattern.permute.xlu0 0
        %1226 = vperm.xlu0 %1225, %v1199
        %v1227 = vpop.permute.xlu0 %1226
        %1228 = vset.pattern.permute.xlu0 0
        %1229 = vperm.xlu0 %1228, %v1201
        %v1230 = vpop.permute.xlu0 %1229
        %1231 = vset.pattern.permute.xlu0 0
        %1232 = vperm.xlu0 %1231, %v1203
        %v1233 = vpop.permute.xlu0 %1232
        %1234 = vset.pattern.permute.xlu0 0
        %1235 = vperm.xlu0 %1234, %v1205
        %v1236 = vpop.permute.xlu0 %1235
        %1237 = vset.pattern.permute.xlu0 0
        %1238 = vperm.xlu0 %1237, %v1207
        %v1239 = vpop.permute.xlu0 %1238
        %v1240 = vperm.slane %v1218, %v1138
        %v1241 = vperm.slane %v1221, %v1138
        %v1242 = vperm.slane %v1224, %v1138
        %v1243 = vperm.slane %v1227, %v1138
        %v1244 = vperm.slane %v1230, %v1138
        %v1245 = vperm.slane %v1233, %v1138
        %v1246 = vperm.slane %v1236, %v1138
        %v1247 = vperm.slane %v1239, %v1138
        %v1248 = vsel %vm1147, %v1241, %v1240
        %v1249 = vsel %vm1149, %v1242, %v1248
        %v1250 = vsel %vm1151, %v1243, %v1249
        %v1251 = vsel %vm1153, %v1244, %v1250
        %v1252 = vsel %vm1155, %v1245, %v1251
        %v1253 = vsel %vm1157, %v1246, %v1252
        %v1254 = vsel %vm1159, %v1247, %v1253
        %v1256 = vsel %vm1162, %v1254, 0.0
        %1257 = vadd.xlane.f32.xlu0 %v1256
        %v1258 = vpop.xlane.xlu0 %1257
        %v1259 = vrcp.pop %v1258
        %v1261 = vperm.slane %v1259, 0
        %v1262 = vperm.slane %v1259, 1
        %v1263 = vperm.slane %v1259, 2
        %v1264 = vperm.slane %v1259, 3
        %v1265 = vperm.slane %v1259, 4
        %v1266 = vperm.slane %v1259, 5
        %v1267 = vperm.slane %v1259, 6
        %v1268 = vperm.slane %v1259, 7
        %v1277 = vmul.f32 %v1193, %v1261
        %v1278 = vmul.f32 %v1195, %v1262
        %v1279 = vmul.f32 %v1197, %v1263
        %v1280 = vmul.f32 %v1199, %v1264
        %v1281 = vmul.f32 %v1201, %v1265
        %v1282 = vmul.f32 %v1203, %v1266
        %v1283 = vmul.f32 %v1205, %v1267
        %v1284 = vmul.f32 %v1207, %v1268
        %1286 = vset.pattern.permute.xlu0 0
        %1287 = vperm.xlu0 %1286, %v1277
        %v1288 = vpop.permute.xlu0 %1287
        %1291 = vset.pattern.permute.xlu0 0
        %1292 = vperm.xlu0 %1291, %v1278
        %v1293 = vpop.permute.xlu0 %1292
        %1296 = vset.pattern.permute.xlu0 0
        %1297 = vperm.xlu0 %1296, %v1279
        %v1298 = vpop.permute.xlu0 %1297
        %1301 = vset.pattern.permute.xlu0 0
        %1302 = vperm.xlu0 %1301, %v1280
        %v1303 = vpop.permute.xlu0 %1302
        %1306 = vset.pattern.permute.xlu0 0
        %1307 = vperm.xlu0 %1306, %v1281
        %v1308 = vpop.permute.xlu0 %1307
        %1311 = vset.pattern.permute.xlu0 0
        %1312 = vperm.xlu0 %1311, %v1282
        %v1313 = vpop.permute.xlu0 %1312
        %1316 = vset.pattern.permute.xlu0 0
        %1317 = vperm.xlu0 %1316, %v1283
        %v1318 = vpop.permute.xlu0 %1317
        %1321 = vset.pattern.permute.xlu0 0
        %1322 = vperm.xlu0 %1321, %v1284
        %v1323 = vpop.permute.xlu0 %1322
        %v1325 = vmul.f32 %v1288, %v527
        %v1326 = vmul.f32 %v1293, %v528
        %v1327 = vmul.f32 %v1298, %v529
        %v1328 = vmul.f32 %v1303, %v530
        %v1329 = vmul.f32 %v1308, %v531
        %v1330 = vmul.f32 %v1313, %v532
        %v1331 = vmul.f32 %v1318, %v533
        %v1332 = vmul.f32 %v1323, %v534
        %v1333 = vsel %vm575, %v1325, 0.0
        %v1334 = vrot.slane %v1333, 4
        %v1335 = vadd.f32 %v1333, %v1334
        %v1336 = vrot.slane %v1335, 2
        %v1337 = vadd.f32 %v1335, %v1336
        %v1338 = vrot.slane %v1337, 1
        %v1339 = vadd.f32 %v1337, %v1338
        %v1340 = vsel %vm575, %v1326, 0.0
        %v1341 = vrot.slane %v1340, 4
        %v1342 = vadd.f32 %v1340, %v1341
        %v1343 = vrot.slane %v1342, 2
        %v1344 = vadd.f32 %v1342, %v1343
        %v1345 = vrot.slane %v1344, 1
        %v1346 = vadd.f32 %v1344, %v1345
        %v1347 = vsel %vm575, %v1327, 0.0
        %v1348 = vrot.slane %v1347, 4
        %v1349 = vadd.f32 %v1347, %v1348
        %v1350 = vrot.slane %v1349, 2
        %v1351 = vadd.f32 %v1349, %v1350
        %v1352 = vrot.slane %v1351, 1
        %v1353 = vadd.f32 %v1351, %v1352
        %v1354 = vsel %vm575, %v1328, 0.0
        %v1355 = vrot.slane %v1354, 4
        %v1356 = vadd.f32 %v1354, %v1355
        %v1357 = vrot.slane %v1356, 2
        %v1358 = vadd.f32 %v1356, %v1357
        %v1359 = vrot.slane %v1358, 1
        %v1360 = vadd.f32 %v1358, %v1359
        %v1361 = vsel %vm575, %v1329, 0.0
        %v1362 = vrot.slane %v1361, 4
        %v1363 = vadd.f32 %v1361, %v1362
        %v1364 = vrot.slane %v1363, 2
        %v1365 = vadd.f32 %v1363, %v1364
        %v1366 = vrot.slane %v1365, 1
        %v1367 = vadd.f32 %v1365, %v1366
        %v1368 = vsel %vm575, %v1330, 0.0
        %v1369 = vrot.slane %v1368, 4
        %v1370 = vadd.f32 %v1368, %v1369
        %v1371 = vrot.slane %v1370, 2
        %v1372 = vadd.f32 %v1370, %v1371
        %v1373 = vrot.slane %v1372, 1
        %v1374 = vadd.f32 %v1372, %v1373
        %v1375 = vsel %vm575, %v1331, 0.0
        %v1376 = vrot.slane %v1375, 4
        %v1377 = vadd.f32 %v1375, %v1376
        %v1378 = vrot.slane %v1377, 2
        %v1379 = vadd.f32 %v1377, %v1378
        %v1380 = vrot.slane %v1379, 1
        %v1381 = vadd.f32 %v1379, %v1380
        %v1382 = vsel %vm575, %v1332, 0.0
        %v1383 = vrot.slane %v1382, 4
        %v1384 = vadd.f32 %v1382, %v1383
        %v1385 = vrot.slane %v1384, 2
        %v1386 = vadd.f32 %v1384, %v1385
        %v1387 = vrot.slane %v1386, 1
        %v1388 = vadd.f32 %v1386, %v1387
        %v1397 = vsel %vm1147, %v1346, %v1339
        %v1398 = vsel %vm1149, %v1353, %v1397
        %v1399 = vsel %vm1151, %v1360, %v1398
        %v1400 = vsel %vm1153, %v1367, %v1399
        %v1401 = vsel %vm1155, %v1374, %v1400
        %v1402 = vsel %vm1157, %v1381, %v1401
        %v1403 = vsel %vm1159, %v1388, %v1402
        %1405 = vst.msk [vmem:[%s514] sm:$0xff] %vm575, %v1403
        %s1406 = sand.u32 %s264, 1
        %s1407 = scalar_lea.sflag [#allocation5], %s1406
        %s1408 = sand.u32 %s264, 1
        %s1409 = smul.addr %s1408, 8
        %s1410 = scalar_lea.vmem [#allocation14], %s1409
        %p1411 = scmp.lt.s32.totalorder %s36, 1
        %s1412 = scalar_select %p1411, %s36, 1
        %s1413 = smul.addr %s1412, 8
        %s1414 = scalar_lea.vmem %s11, %s1413
        // Predicated region
        $region85: #{tpu_custom_call.1} parent=59 // pred_check
          %p1415 = pneg %p274
        $region86: #{tpu_custom_call.1} parent=59 // pred_check_branch
          %1417 = sbr.rel (%p1415) target = $region88
        $region87: #{tpu_custom_call.1} parent=59 // pred_region
          %1419 = vsyncadd %s1407, 0
          %s1420 = smul.addr %s36, 8
          %s1421 = scalar_lea.hbm %s10, %s1420
          %s1423 = sshll.u32 %s1410, 4
          %s1424 = int_to_ptr.vmem [resolvable:$true] %s1423
          %s1425 = sshll.u32 %s1421, 4
          %s1426 = int_to_ptr.hbm [resolvable:$true] %s1425
          %1428 = dma.vmem_to_hbm [thread:$0]  %s1424, 128, %s1426, %s1407
        $region88: #{tpu_custom_call.1} parent=59 // pred_fallthru
          _
        // Predicated region
        $region89: #{tpu_custom_call.1} parent=59 // pred_check
          %p1429 = pneg %p300
        $region90: #{tpu_custom_call.1} parent=59 // pred_check_branch
          %1431 = sbr.rel (%p1429) target = $region92
        $region91: #{tpu_custom_call.1} parent=59 // pred_region
          _
        $region92: #{tpu_custom_call.1} parent=59 // pred_fallthru
          _
      $region60: #{tpu_custom_call.1} parent=5 // pred_fallthru
        _
      %p1432 = scmp.le.s32.totalorder 2, %s31
      // Predicated region
      $region93: #{tpu_custom_call.1} parent=5 // pred_check
        %p1433 = pneg %p1432
      $region94: #{tpu_custom_call.1} parent=5 // pred_check_branch
        %1435 = sbr.rel (%p1433) target = $region96
      $region95: #{tpu_custom_call.1} parent=5 // pred_region
        %s1436 = ssub.s32 %s31, 2
        // Predicated region
        $region97: #{tpu_custom_call.1} parent=95 // pred_check
          %p1437 = pneg %p280
        $region98: #{tpu_custom_call.1} parent=95 // pred_check_branch
          %1439 = sbr.rel (%p1437) target = $region100
        $region99: #{tpu_custom_call.1} parent=95 // pred_region
          %s1440 = sand.u32 %s265, 1
          %s1441 = scalar_lea.sflag [#allocation5], %s1440
          %s1442 = sand.u32 %s265, 1
          %s1443 = smul.addr %s1442, 8
          %s1444 = scalar_lea.vmem [#allocation14], %s1443
          %1446 = dma.done %s1441, 128
        $region100: #{tpu_custom_call.1} parent=95 // pred_fallthru
          _
        // Predicated region
        $region101: #{tpu_custom_call.1} parent=95 // pred_check
          %p1447 = pneg %p306
        $region102: #{tpu_custom_call.1} parent=95 // pred_check_branch
          %1449 = sbr.rel (%p1447) target = $region104
        $region103: #{tpu_custom_call.1} parent=95 // pred_region
          %p1450 = scmp.lt.s32.totalorder %s37, 1
          %s1451 = scalar_select %p1450, %s37, 1
          %s1452 = smul.addr %s1451, 8
          %s1453 = scalar_lea.vmem %s11, %s1452
        $region104: #{tpu_custom_call.1} parent=95 // pred_fallthru
          _
      $region96: #{tpu_custom_call.1} parent=5 // pred_fallthru
        _
    $region6: #{tpu_custom_call.1} parent=1 // loop_footer
      %s35 = sadd.s32 1, %s31
    $region7: #{tpu_custom_call.1} parent=1 // loop_footer_branch
      %30 = sbr.rel target = $region3
    $region8: #{tpu_custom_call.1} parent=1 // loop_exit
      _
    %1454 = vsyncpa [#allocation4], 1
    %s1455 = scalar_lea.sflag [#allocation4], 1
    %1456 = vsyncpa %s1455, 1
    %1457 = vsyncpa [#allocation7], 1
    %s1458 = scalar_lea.sflag [#allocation7], 1
    %1459 = vsyncpa %s1458, 1
    %1460 = vsyncpa [#allocation10], 1
    %1461 = vsyncpa [#allocation13], 1
    %1462 = vsyncpa [#allocation5], 1
    %s1463 = scalar_lea.sflag [#allocation5], 1
    %1464 = vsyncpa %s1463, 1

</llo_original>
